<compile_context>
chip_gen: v7x
topology: tpu7x:2x2x1
jax: 0.10.0
libtpu: 0.0.40
codegen_flags: <defaults>
</compile_context>

<pallas_src>
import jax
import jax.numpy as jnp
from jax import lax
from jax.experimental import pallas as pl
from jax.experimental.pallas import tpu as pltpu

# ---- model config (matches Autoencoder([256, 128], [256, 512])) ------------
IN_DIM = 512
E0, E1 = 256, 128          # encoder hidden dims
D0, D1 = 256, 512          # decoder hidden dims
BN_EPS = 1e-5

# Static lane offsets into the merged small-vector input (all multiples of 128
# -> lane-aligned slices, no relayout copies).
OFF_B1, OFF_G1, OFF_BE1 = 0, E0, 2 * E0
OFF_B2 = 3 * E0            # 768
OFF_B3 = OFF_B2 + E1       # 896
OFF_B4 = OFF_B3 + D0       # 1152
VEC_LEN = OFF_B4 + D1      # 1664 = 13 * 128

# ---- demo sizes -------------------------------------------------------------
N_STEPS = 4                # independent mini-batches per pallas_call (grid)
BATCH = 128                # rows per mini-batch (>= 128 -> good MXU row util)


def autoencoder_kernel(x_ref, w1_ref, w2_ref, w3_ref, w4_ref, vec_ref, o_ref):
    x = x_ref[...]                                            # [B, 512] f32

    # Static, lane-aligned slices of the single merged bias/BN vector.
    b1 = vec_ref[:, OFF_B1:OFF_B1 + E0]
    g1 = vec_ref[:, OFF_G1:OFF_G1 + E0]
    be1 = vec_ref[:, OFF_BE1:OFF_BE1 + E0]
    b2 = vec_ref[:, OFF_B2:OFF_B2 + E1]
    b3 = vec_ref[:, OFF_B3:OFF_B3 + D0]
    b4 = vec_ref[:, OFF_B4:OFF_B4 + D1]

    # ---------------- encoder ----------------
    # Linear(512 -> 256): bf16 x bf16 on MXU, f32 accumulate.
    h = jnp.dot(x.astype(jnp.bfloat16), w1_ref[...],
                preferred_element_type=jnp.float32) + b1

    # BatchNorm1d(256), training-mode batch stats over this step's batch.
    # One fused sublane reduction over [h | h*h] (single XLU pass), folded into
    # a single scale/shift.  Variance clamped >= 0 (one-pass cancellation guard).
    inv_b = 1.0 / h.shape[0]
    stats = jnp.sum(jnp.concatenate([h, h * h], axis=-1),
                    axis=0, keepdims=True)                    # [1, 2*E0] f32
    mu = stats[:, :E0] * inv_b
    var = jnp.maximum(stats[:, E0:] * inv_b - mu * mu, 0.0)
    scale = g1 * lax.rsqrt(var + BN_EPS)
    shift = be1 - mu * scale
    h = jnp.maximum(h * scale + shift, 0.0)                   # BN + ReLU

    # Linear(256 -> 128)
    h = jnp.dot(h.astype(jnp.bfloat16), w2_ref[...],
                preferred_element_type=jnp.float32) + b2
    # x = x / x.norm(dim=-1, keepdim=True)  -> rsqrt on EUP
    h = h * lax.rsqrt(jnp.sum(h * h, axis=-1, keepdims=True))

    # ---------------- decoder ----------------
    # Linear(128 -> 256) + ReLU
    d = jnp.dot(h.astype(jnp.bfloat16), w3_ref[...],
                preferred_element_type=jnp.float32) + b3
    d = jnp.maximum(d, 0.0)

    # Linear(256 -> 512)
    d = jnp.dot(d.astype(jnp.bfloat16), w4_ref[...],
                preferred_element_type=jnp.float32) + b4
    # x = x / x.norm(dim=-1, keepdim=True)
    d = d * lax.rsqrt(jnp.sum(d * d, axis=-1, keepdims=True))

    o_ref[...] = d.astype(o_ref.dtype)


def autoencoder_forward(x, params):
    """x: [N_STEPS, B, 512] f32 -- N_STEPS independent mini-batches, one forward
    of the PyTorch module each (so BatchNorm batch statistics stay exact)."""
    n, b, in_dim = x.shape
    assert in_dim == IN_DIM and b % 8 == 0

    args = (x, params["w1"], params["w2"], params["w3"], params["w4"],
            params["vec"])

    const = lambda i: (0, 0)   # same block every step -> DMA once, VMEM-resident
    in_specs = [
        pl.BlockSpec((None, b, IN_DIM), lambda i: (i, 0, 0)),   # per-step batch
        pl.BlockSpec((IN_DIM, E0), const),                      # w1 (bf16)
        pl.BlockSpec((E0, E1), const),                          # w2 (bf16)
        pl.BlockSpec((E1, D0), const),                          # w3 (bf16)
        pl.BlockSpec((D0, D1), const),                          # w4 (bf16)
        pl.BlockSpec((1, VEC_LEN), const),                      # merged biases/BN
    ]
    out_specs = pl.BlockSpec((None, b, D1), lambda i: (i, 0, 0))

    bytes_accessed = sum(int(a.size) * a.dtype.itemsize for a in args)
    bytes_accessed += n * b * D1 * 4
    cost = pl.CostEstimate(
        flops=2 * n * b * (IN_DIM * E0 + E0 * E1 + E1 * D0 + D0 * D1),
        transcendentals=n * (2 * b + E0),
        bytes_accessed=bytes_accessed,
    )

    return pl.pallas_call(
        autoencoder_kernel,
        out_shape=jax.ShapeDtypeStruct((n, b, D1), jnp.float32),
        grid=(n,),
        in_specs=in_specs,
        out_specs=out_specs,
        compiler_params=pltpu.CompilerParams(
            dimension_semantics=("parallel",)),   # v7x: split steps across TCs
        cost_estimate=cost,
    )(*args)


def init_params(key):
    """Deterministic synthetic parameters with PyTorch-like init.

    Linear weights are stored [in, out] (transposed vs. torch's [out, in]) both
    as f32 masters (reference) and bf16 copies (kernel).  The six small vectors
    (biases + BN gamma/beta) are additionally merged into one [1, 1664] f32
    array so the kernel pays a single DMA for all of them.
    """
    ks = jax.random.split(key, 8)

    def lin(kw, kb, fan_in, fan_out):
        bound = 1.0 / jnp.sqrt(fan_in)
        w = jax.random.uniform(kw, (fan_in, fan_out), jnp.float32, -bound, bound)
        b = jax.random.uniform(kb, (1, fan_out), jnp.float32, -bound, bound)
        return w, b

    w1, b1 = lin(ks[0], ks[1], IN_DIM, E0)       # Linear(512, 256)
    w2, b2 = lin(ks[2], ks[3], E0, E1)           # Linear(256, 128)
    w3, b3 = lin(ks[4], ks[5], E1, D0)           # Linear(128, 256)
    w4, b4 = lin(ks[6], ks[7], D0, D1)           # Linear(256, 512)

    # BatchNorm1d(256): gamma = 1, beta = 0 (PyTorch default init)
    g1 = jnp.ones((1, E0), jnp.float32)
    be1 = jnp.zeros((1, E0), jnp.float32)

    vec = jnp.concatenate([b1, g1, be1, b2, b3, b4], axis=-1)  # [1, 1664] f32

    return dict(
        w1=w1.astype(jnp.bfloat16), w2=w2.astype(jnp.bfloat16),
        w3=w3.astype(jnp.bfloat16), w4=w4.astype(jnp.bfloat16),
        w1_f32=w1, w2_f32=w2, w3_f32=w3, w4_f32=w4,
        b1=b1, g1=g1, be1=be1, b2=b2, b3=b3, b4=b4,
        vec=vec,
    )


def reference_forward(x, p, weight_dtype):
    """Pure-JAX reference mirroring the PyTorch forward (training-mode BN),
    applied independently to each mini-batch along the leading steps axis."""
    use_bf16 = weight_dtype == jnp.bfloat16

    def w(name):
        return p[name] if use_bf16 else p[name + "_f32"]

    def mm(a, wt):
        return jnp.dot(a.astype(weight_dtype), wt.astype(weight_dtype),
                       preferred_element_type=jnp.float32)

    def single(xs):
        h = mm(xs, w("w1")) + p["b1"]
        mu = jnp.mean(h, axis=0, keepdims=True)
        var = jnp.mean((h - mu) ** 2, axis=0, keepdims=True)
        h = (h - mu) / jnp.sqrt(var + BN_EPS) * p["g1"] + p["be1"]
        h = jnp.maximum(h, 0.0)
        h = mm(h, w("w2")) + p["b2"]
        h = h / jnp.linalg.norm(h, axis=-1, keepdims=True)
        d = mm(h, w("w3")) + p["b3"]
        d = jnp.maximum(d, 0.0)
        d = mm(d, w("w4")) + p["b4"]
        d = d / jnp.linalg.norm(d, axis=-1, keepdims=True)
        return d

    return jax.vmap(single)(x)


if __name__ == "__main__":
    key = jax.random.PRNGKey(0)
    k_x, k_p = jax.random.split(key)

    x = jax.random.normal(k_x, (N_STEPS, BATCH, IN_DIM), jnp.float32)
    params = init_params(k_p)

    out = jax.block_until_ready(autoencoder_forward(x, params))
    assert out.shape == (N_STEPS, BATCH, D1)
    assert bool(jnp.all(jnp.isfinite(out))), "non-finite values in kernel output"

    # Tight check vs a pure-JAX reference using the same bf16 weights.
    ref_bf16 = reference_forward(x, params, jnp.bfloat16)
    assert jnp.allclose(out, ref_bf16, atol=1e-3, rtol=1e-3), \
        "mismatch vs bf16-weight JAX reference"

    # Sanity check vs full-f32 module semantics (loose tolerance: the only
    # difference is the bf16 weight quantization).
    ref_f32 = reference_forward(x, params, jnp.float32)
    assert jnp.allclose(out, ref_f32, atol=5e-2, rtol=5e-2), \
        "mismatch vs f32 JAX reference"

    print("KERNEL_OK")
</pallas_src>

<mosaic_0001>
module attributes {stable_mosaic.version = 11 : i64} {
  func.func @autoencoder_kernel(%arg0: i32, %arg1: memref<1x128x512xf32, #tpu.memory_space<vmem>>, %arg2: memref<512x256xbf16, #tpu.memory_space<vmem>>, %arg3: memref<256x128xbf16, #tpu.memory_space<vmem>>, %arg4: memref<128x256xbf16, #tpu.memory_space<vmem>>, %arg5: memref<256x512xbf16, #tpu.memory_space<vmem>>, %arg6: memref<1x1664xf32, #tpu.memory_space<vmem>>, %arg7: memref<1x128x512xf32, #tpu.memory_space<vmem>>) attributes {dimension_semantics = [#tpu.dimension_semantics<parallel>], iteration_bounds = array<i64: 4>, scalar_prefetch = 0 : i64, scratch_operands = 0 : i64, tpu.core_type = #tpu.core_type<tc>, window_params = [{transform_indices = @transform_0, window_bounds = array<i64: 1, 128, 512>}, {pipeline_mode = #tpu.pipeline_mode<synchronous>, transform_indices = @transform_1, window_bounds = array<i64: 512, 256>}, {pipeline_mode = #tpu.pipeline_mode<synchronous>, transform_indices = @transform_2, window_bounds = array<i64: 256, 128>}, {pipeline_mode = #tpu.pipeline_mode<synchronous>, transform_indices = @transform_3, window_bounds = array<i64: 128, 256>}, {pipeline_mode = #tpu.pipeline_mode<synchronous>, transform_indices = @transform_4, window_bounds = array<i64: 256, 512>}, {pipeline_mode = #tpu.pipeline_mode<synchronous>, transform_indices = @transform_5, window_bounds = array<i64: 1, 1664>}, {transform_indices = @transform_6, window_bounds = array<i64: 1, 128, 512>}]} {
    %c0 = arith.constant 0 : index
    %c0_0 = arith.constant 0 : index
    %c0_1 = arith.constant 0 : index
    %0 = vector.load %arg1[%c0, %c0_0, %c0_1] : memref<1x128x512xf32, #tpu.memory_space<vmem>>, vector<1x128x512xf32>
    %1 = vector.shape_cast %0 : vector<1x128x512xf32> to vector<128x512xf32>
    %c0_2 = arith.constant 0 : index
    %c0_3 = arith.constant 0 : index
    %2 = vector.load %arg6[%c0_2, %c0_3] : memref<1x1664xf32, #tpu.memory_space<vmem>>, vector<1x256xf32>
    %c0_4 = arith.constant 0 : index
    %c256 = arith.constant 256 : index
    %3 = vector.load %arg6[%c0_4, %c256] : memref<1x1664xf32, #tpu.memory_space<vmem>>, vector<1x256xf32>
    %c0_5 = arith.constant 0 : index
    %c512 = arith.constant 512 : index
    %4 = vector.load %arg6[%c0_5, %c512] : memref<1x1664xf32, #tpu.memory_space<vmem>>, vector<1x256xf32>
    %c0_6 = arith.constant 0 : index
    %c768 = arith.constant 768 : index
    %5 = vector.load %arg6[%c0_6, %c768] : memref<1x1664xf32, #tpu.memory_space<vmem>>, vector<1x128xf32>
    %c0_7 = arith.constant 0 : index
    %c896 = arith.constant 896 : index
    %6 = vector.load %arg6[%c0_7, %c896] : memref<1x1664xf32, #tpu.memory_space<vmem>>, vector<1x256xf32>
    %c0_8 = arith.constant 0 : index
    %c1152 = arith.constant 1152 : index
    %7 = vector.load %arg6[%c0_8, %c1152] : memref<1x1664xf32, #tpu.memory_space<vmem>>, vector<1x512xf32>
    %8 = arith.truncf %1 : vector<128x512xf32> to vector<128x512xbf16>
    %c0_9 = arith.constant 0 : index
    %c0_10 = arith.constant 0 : index
    %9 = vector.load %arg2[%c0_9, %c0_10] : memref<512x256xbf16, #tpu.memory_space<vmem>>, vector<512x256xbf16>
    %cst = arith.constant dense<0.000000e+00> : vector<128x256xf32>
    %10 = tpu.matmul %8, %9, %cst {dimension_numbers = #tpu.dot_dimension_numbers<[1], [0], [0], [1], [0, 0, 1, 1], [], []>} : vector<128x512xbf16>, vector<512x256xbf16>, vector<128x256xf32> -> vector<128x256xf32>
    %11 = vector.broadcast %2 : vector<1x256xf32> to vector<128x256xf32>
    %12 = arith.addf %10, %11 : vector<128x256xf32>
    %13 = arith.mulf %12, %12 : vector<128x256xf32>
    %14 = tpu.concatenate %12, %13 in 1 : vector<128x256xf32>, vector<128x256xf32> -> vector<128x512xf32>
    %cst_11 = arith.constant dense<0.000000e+00> : vector<512xf32>
    %15 = vector.multi_reduction <add>, %14, %cst_11 [0] : vector<128x512xf32> to vector<512xf32>
    %16 = vector.shape_cast %15 : vector<512xf32> to vector<1x512xf32>
    %17 = vector.extract_strided_slice %16 {offsets = [0, 0], sizes = [1, 256], strides = [1, 1]} : vector<1x512xf32> to vector<1x256xf32>
    %cst_12 = arith.constant 7.812500e-03 : f32
    %18 = vector.broadcast %cst_12 : f32 to vector<1x256xf32>
    %19 = arith.mulf %17, %18 : vector<1x256xf32>
    %20 = vector.extract_strided_slice %16 {offsets = [0, 256], sizes = [1, 256], strides = [1, 1]} : vector<1x512xf32> to vector<1x256xf32>
    %cst_13 = arith.constant 7.812500e-03 : f32
    %21 = vector.broadcast %cst_13 : f32 to vector<1x256xf32>
    %22 = arith.mulf %20, %21 : vector<1x256xf32>
    %23 = arith.mulf %19, %19 : vector<1x256xf32>
    %24 = arith.subf %22, %23 : vector<1x256xf32>
    %cst_14 = arith.constant 0.000000e+00 : f32
    %25 = vector.broadcast %cst_14 : f32 to vector<1x256xf32>
    %26 = arith.maximumf %24, %25 : vector<1x256xf32>
    %cst_15 = arith.constant 9.99999974E-6 : f32
    %27 = vector.broadcast %cst_15 : f32 to vector<1x256xf32>
    %28 = arith.addf %26, %27 : vector<1x256xf32>
    %29 = math.rsqrt %28 : vector<1x256xf32>
    %30 = arith.mulf %3, %29 : vector<1x256xf32>
    %31 = arith.mulf %19, %30 : vector<1x256xf32>
    %32 = arith.subf %4, %31 : vector<1x256xf32>
    %33 = vector.broadcast %30 : vector<1x256xf32> to vector<128x256xf32>
    %34 = arith.mulf %12, %33 : vector<128x256xf32>
    %35 = vector.broadcast %32 : vector<1x256xf32> to vector<128x256xf32>
    %36 = arith.addf %34, %35 : vector<128x256xf32>
    %cst_16 = arith.constant 0.000000e+00 : f32
    %37 = vector.broadcast %cst_16 : f32 to vector<128x256xf32>
    %38 = arith.maximumf %36, %37 : vector<128x256xf32>
    %39 = arith.truncf %38 : vector<128x256xf32> to vector<128x256xbf16>
    %c0_17 = arith.constant 0 : index
    %c0_18 = arith.constant 0 : index
    %40 = vector.load %arg3[%c0_17, %c0_18] : memref<256x128xbf16, #tpu.memory_space<vmem>>, vector<256x128xbf16>
    %cst_19 = arith.constant dense<0.000000e+00> : vector<128x128xf32>
    %41 = tpu.matmul %39, %40, %cst_19 {dimension_numbers = #tpu.dot_dimension_numbers<[1], [0], [0], [1], [0, 0, 1, 1], [], []>} : vector<128x256xbf16>, vector<256x128xbf16>, vector<128x128xf32> -> vector<128x128xf32>
    %42 = vector.broadcast %5 : vector<1x128xf32> to vector<128x128xf32>
    %43 = arith.addf %41, %42 : vector<128x128xf32>
    %44 = arith.mulf %43, %43 : vector<128x128xf32>
    %cst_20 = arith.constant dense<0.000000e+00> : vector<128xf32>
    %45 = vector.multi_reduction <add>, %44, %cst_20 [1] : vector<128x128xf32> to vector<128xf32>
    %46 = vector.shape_cast %45 : vector<128xf32> to vector<128x1xf32>
    %47 = math.rsqrt %46 : vector<128x1xf32>
    %48 = vector.broadcast %47 : vector<128x1xf32> to vector<128x128xf32>
    %49 = arith.mulf %43, %48 : vector<128x128xf32>
    %50 = arith.truncf %49 : vector<128x128xf32> to vector<128x128xbf16>
    %c0_21 = arith.constant 0 : index
    %c0_22 = arith.constant 0 : index
    %51 = vector.load %arg4[%c0_21, %c0_22] : memref<128x256xbf16, #tpu.memory_space<vmem>>, vector<128x256xbf16>
    %cst_23 = arith.constant dense<0.000000e+00> : vector<128x256xf32>
    %52 = tpu.matmul %50, %51, %cst_23 {dimension_numbers = #tpu.dot_dimension_numbers<[1], [0], [0], [1], [0, 0, 1, 1], [], []>} : vector<128x128xbf16>, vector<128x256xbf16>, vector<128x256xf32> -> vector<128x256xf32>
    %53 = vector.broadcast %6 : vector<1x256xf32> to vector<128x256xf32>
    %54 = arith.addf %52, %53 : vector<128x256xf32>
    %cst_24 = arith.constant 0.000000e+00 : f32
    %55 = vector.broadcast %cst_24 : f32 to vector<128x256xf32>
    %56 = arith.maximumf %54, %55 : vector<128x256xf32>
    %57 = arith.truncf %56 : vector<128x256xf32> to vector<128x256xbf16>
    %c0_25 = arith.constant 0 : index
    %c0_26 = arith.constant 0 : index
    %58 = vector.load %arg5[%c0_25, %c0_26] : memref<256x512xbf16, #tpu.memory_space<vmem>>, vector<256x512xbf16>
    %cst_27 = arith.constant dense<0.000000e+00> : vector<128x512xf32>
    %59 = tpu.matmul %57, %58, %cst_27 {dimension_numbers = #tpu.dot_dimension_numbers<[1], [0], [0], [1], [0, 0, 1, 1], [], []>} : vector<128x256xbf16>, vector<256x512xbf16>, vector<128x512xf32> -> vector<128x512xf32>
    %60 = vector.broadcast %7 : vector<1x512xf32> to vector<128x512xf32>
    %61 = arith.addf %59, %60 : vector<128x512xf32>
    %62 = arith.mulf %61, %61 : vector<128x512xf32>
    %cst_28 = arith.constant dense<0.000000e+00> : vector<128xf32>
    %63 = vector.multi_reduction <add>, %62, %cst_28 [1] : vector<128x512xf32> to vector<128xf32>
    %64 = vector.shape_cast %63 : vector<128xf32> to vector<128x1xf32>
    %65 = math.rsqrt %64 : vector<128x1xf32>
    %66 = vector.broadcast %65 : vector<128x1xf32> to vector<128x512xf32>
    %67 = arith.mulf %61, %66 : vector<128x512xf32>
    %c0_29 = arith.constant 0 : index
    %c0_30 = arith.constant 0 : index
    %c0_31 = arith.constant 0 : index
    %68 = vector.load %arg7[%c0_29, %c0_30, %c0_31] : memref<1x128x512xf32, #tpu.memory_space<vmem>>, vector<1x128x512xf32>
    %69 = vector.shape_cast %68 : vector<1x128x512xf32> to vector<128x512xf32>
    %70 = vector.shape_cast %67 : vector<128x512xf32> to vector<1x128x512xf32>
    tpu.vector_store %arg7[%c0_29, %c0_30, %c0_31], %70 {strides = array<i32>} : memref<1x128x512xf32, #tpu.memory_space<vmem>>, vector<1x128x512xf32>,
    return
  }
  func.func @transform_0(%arg0: i32) -> (i32, i32, i32) {
    %c0_i32 = arith.constant 0 : i32
    %c0_i32_0 = arith.constant 0 : i32
    %c0_i32_1 = arith.constant 0 : i32
    return %arg0, %c0_i32, %c0_i32_0 : i32, i32, i32
  }
  func.func @transform_1(%arg0: i32) -> (i32, i32) {
    %c0_i32 = arith.constant 0 : i32
    %c0_i32_0 = arith.constant 0 : i32
    %c0_i32_1 = arith.constant 0 : i32
    return %c0_i32, %c0_i32_0 : i32, i32
  }
  func.func @transform_2(%arg0: i32) -> (i32, i32) {
    %c0_i32 = arith.constant 0 : i32
    %c0_i32_0 = arith.constant 0 : i32
    %c0_i32_1 = arith.constant 0 : i32
    return %c0_i32, %c0_i32_0 : i32, i32
  }
  func.func @transform_3(%arg0: i32) -> (i32, i32) {
    %c0_i32 = arith.constant 0 : i32
    %c0_i32_0 = arith.constant 0 : i32
    %c0_i32_1 = arith.constant 0 : i32
    return %c0_i32, %c0_i32_0 : i32, i32
  }
  func.func @transform_4(%arg0: i32) -> (i32, i32) {
    %c0_i32 = arith.constant 0 : i32
    %c0_i32_0 = arith.constant 0 : i32
    %c0_i32_1 = arith.constant 0 : i32
    return %c0_i32, %c0_i32_0 : i32, i32
  }
  func.func @transform_5(%arg0: i32) -> (i32, i32) {
    %c0_i32 = arith.constant 0 : i32
    %c0_i32_0 = arith.constant 0 : i32
    %c0_i32_1 = arith.constant 0 : i32
    return %c0_i32, %c0_i32_0 : i32, i32
  }
  func.func @transform_6(%arg0: i32) -> (i32, i32, i32) {
    %c0_i32 = arith.constant 0 : i32
    %c0_i32_0 = arith.constant 0 : i32
    %c0_i32_1 = arith.constant 0 : i32
    return %arg0, %c0_i32, %c0_i32_0 : i32, i32, i32
  }
}

</mosaic_0001>

<llo_original>
// kernel: tpu_custom_call.1
$region0: #{tpu_custom_call.1}
  #allocation0 [shape = 'u32[]', space=smem, size = 0x4, offset = 0x4, fixed_abs, tag = 'smem constant byte address 0x4 - core index']
  #allocation1 [shape = 'u32[144,128]{1,0:T(1,128)}', space=vmem, size = 0x12000, scoped, tag = 'internal scratch']
  %s0 = inlined_call_operand.hbm [shape: f32[4,128,512], index: 0, kind: input, shape index: {}]
  %s1 = inlined_call_operand.hbm [shape: bf16[512,256], index: 1, kind: input, shape index: {}]
  %s2 = inlined_call_operand.hbm [shape: bf16[256,128], index: 2, kind: input, shape index: {}]
  %s3 = inlined_call_operand.hbm [shape: bf16[128,256], index: 3, kind: input, shape index: {}]
  %s4 = inlined_call_operand.hbm [shape: bf16[256,512], index: 4, kind: input, shape index: {}]
  %s5 = inlined_call_operand.vmem [shape: f32[1,1664], index: 5, kind: input, shape index: {}]
  %s6 = inlined_call_operand.hbm [shape: f32[4,128,512], index: 6, kind: output, shape index: {}]
  %s7 = sld [smem:[#allocation0]]
  $region77: #{tpu_custom_call.1} parent=0
    _
  %s9 = ssub.s32 1, %s7
  %s10 = scalar_select 0, %s9, %s7
  $region1: #{tpu_custom_call.1} parent=0
    #allocation2 [shape = 'u8[524288]{0}', space=vmem, size = 0x80000, scoped, tag = 'input window, operand 0']
    #allocation3 [shape = 's32[2]{0}', space=sflag, size = 0x8, scoped, tag = 'scoped memory for tpu_custom_call.1']
    #allocation4 [shape = 's32[2]{0}', space=sflag, size = 0x8, scoped, tag = 'scoped memory for tpu_custom_call.1']
    #allocation5 [shape = 'u8[262144]{0}', space=vmem, size = 0x40000, scoped, tag = 'input window, operand 1, single buffered']
    #allocation6 [shape = 's32[1]{0}', space=sflag, size = 0x4, scoped, tag = 'scoped memory for tpu_custom_call.1']
    #allocation7 [shape = 'u8[65536]{0}', space=vmem, size = 0x10000, scoped, tag = 'input window, operand 2, single buffered']
    #allocation8 [shape = 'u8[65536]{0}', space=vmem, size = 0x10000, scoped, tag = 'input window, operand 3, single buffered']
    #allocation9 [shape = 's32[1]{0}', space=sflag, size = 0x4, scoped, tag = 'scoped memory for tpu_custom_call.1']
    #allocation10 [shape = 'u8[262144]{0}', space=vmem, size = 0x40000, scoped, tag = 'input window, operand 4, single buffered']
    #allocation11 [shape = 'u8[524288]{0}', space=vmem, size = 0x80000, scoped, tag = 'output window, operand 0']
    %11 = vsyncpa [#allocation3], 0
    %s12 = scalar_lea.sflag [#allocation3], 1
    %13 = vsyncpa %s12, 0
    %14 = vsyncpa [#allocation6], 0
    %15 = vsyncpa [#allocation9], 0
    %16 = vsyncpa [#allocation4], 0
    %s17 = scalar_lea.sflag [#allocation4], 1
    %18 = vsyncpa %s17, 0
    loop: start=0, step=1, limit=6
    $region2: #{tpu_custom_call.1} parent=1 // loop_pre_header
      _
    $region3: #{tpu_custom_call.1} parent=1 // loop_header
      %s20 = sphi 0, %s24
      %p21 = scmp.ge.s32.totalorder %s20, 6
      %s30 = sphi 0, %s32
      %s33 = sphi 0, %s30
      %s34 = sphi 0, %s33
      %s50 = sphi 0, %s34
      %s54 = sphi 0, %s54
      %s56 = sphi 0, %s54
      %s57 = sphi 0, %s56
      %s71 = sphi 0, %s57
      %s75 = sphi 0, %s75
      %s77 = sphi 0, %s75
      %s78 = sphi 0, %s77
      %s92 = sphi 0, %s78
      %s96 = sphi 0, %s96
      %s98 = sphi 0, %s96
      %s99 = sphi 0, %s98
      %s113 = sphi 0, %s99
      %s117 = sphi 0, %s117
      %s119 = sphi 0, %s117
      %s120 = sphi 0, %s119
      %s134 = sphi 0, %s120
      %s138 = sphi 0, %s138
      %s140 = sphi 0, %s138
      %s141 = sphi 0, %s140
      %s155 = sphi 0, %s141
      %s161 = sphi 0, %s163
      %s164 = sphi 0, %s161
      %s165 = sphi 0, %s164
      %s181 = sphi 0, %s165
    $region4: #{tpu_custom_call.1} parent=1 // loop_header_branch
      %23 = sbr.rel (%p21) target = $region8
    $region5: #{tpu_custom_call.1} parent=1 // loop_body
      %s25 = ssub.s32 %s20, 1
      %s26 = ssub.s32 %s20, 2
      %s27 = sadd.s32 %s20, 1
      %s28 = ssub.s32 %s20, %s27
      %p29 = scmp.eq.s32.totalorder %s28, 0
      %s31 = sadd.s32 %s30, 1
      %s32 = scalar_select %p29, %s30, %s31
      %p35 = pneg %p29
      %p36 = scmp.eq.s32.totalorder %s20, 3
      %p37 = por %p35, %p36
      %p38 = scmp.ne.s32.totalorder %s30, %s33
      %p39 = scmp.eq.s32.totalorder %s20, 0
      %p40 = por %p38, %p39
      %p41 = scmp.ne.s32.totalorder %s30, %s33
      %p42 = scmp.eq.s32.totalorder %s25, 3
      %p43 = por %p41, %p42
      %p44 = scmp.ne.s32.totalorder %s33, %s34
      %p45 = scmp.eq.s32.totalorder %s25, 0
      %p46 = por %p44, %p45
      %p47 = scmp.ne.s32.totalorder %s33, %s34
      %p48 = scmp.eq.s32.totalorder %s26, 3
      %p49 = por %p47, %p48
      %p51 = scmp.ne.s32.totalorder %s34, %s50
      %p52 = scmp.eq.s32.totalorder %s26, 0
      %p53 = por %p51, %p52
      %s55 = sadd.s32 %s54, 1
      %p58 = scmp.eq.s32.totalorder %s20, 3
      %p59 = scmp.ne.s32.totalorder %s54, %s56
      %p60 = scmp.eq.s32.totalorder %s20, 0
      %p61 = por %p59, %p60
      %p62 = scmp.ne.s32.totalorder %s54, %s56
      %p63 = scmp.eq.s32.totalorder %s25, 3
      %p64 = por %p62, %p63
      %p65 = scmp.ne.s32.totalorder %s56, %s57
      %p66 = scmp.eq.s32.totalorder %s25, 0
      %p67 = por %p65, %p66
      %p68 = scmp.ne.s32.totalorder %s56, %s57
      %p69 = scmp.eq.s32.totalorder %s26, 3
      %p70 = por %p68, %p69
      %p72 = scmp.ne.s32.totalorder %s57, %s71
      %p73 = scmp.eq.s32.totalorder %s26, 0
      %p74 = por %p72, %p73
      %s76 = sadd.s32 %s75, 1
      %p79 = scmp.eq.s32.totalorder %s20, 3
      %p80 = scmp.ne.s32.totalorder %s75, %s77
      %p81 = scmp.eq.s32.totalorder %s20, 0
      %p82 = por %p80, %p81
      %p83 = scmp.ne.s32.totalorder %s75, %s77
      %p84 = scmp.eq.s32.totalorder %s25, 3
      %p85 = por %p83, %p84
      %p86 = scmp.ne.s32.totalorder %s77, %s78
      %p87 = scmp.eq.s32.totalorder %s25, 0
      %p88 = por %p86, %p87
      %p89 = scmp.ne.s32.totalorder %s77, %s78
      %p90 = scmp.eq.s32.totalorder %s26, 3
      %p91 = por %p89, %p90
      %p93 = scmp.ne.s32.totalorder %s78, %s92
      %p94 = scmp.eq.s32.totalorder %s26, 0
      %p95 = por %p93, %p94
      %s97 = sadd.s32 %s96, 1
      %p100 = scmp.eq.s32.totalorder %s20, 3
      %p101 = scmp.ne.s32.totalorder %s96, %s98
      %p102 = scmp.eq.s32.totalorder %s20, 0
      %p103 = por %p101, %p102
      %p104 = scmp.ne.s32.totalorder %s96, %s98
      %p105 = scmp.eq.s32.totalorder %s25, 3
      %p106 = por %p104, %p105
      %p107 = scmp.ne.s32.totalorder %s98, %s99
      %p108 = scmp.eq.s32.totalorder %s25, 0
      %p109 = por %p107, %p108
      %p110 = scmp.ne.s32.totalorder %s98, %s99
      %p111 = scmp.eq.s32.totalorder %s26, 3
      %p112 = por %p110, %p111
      %p114 = scmp.ne.s32.totalorder %s99, %s113
      %p115 = scmp.eq.s32.totalorder %s26, 0
      %p116 = por %p114, %p115
      %s118 = sadd.s32 %s117, 1
      %p121 = scmp.eq.s32.totalorder %s20, 3
      %p122 = scmp.ne.s32.totalorder %s117, %s119
      %p123 = scmp.eq.s32.totalorder %s20, 0
      %p124 = por %p122, %p123
      %p125 = scmp.ne.s32.totalorder %s117, %s119
      %p126 = scmp.eq.s32.totalorder %s25, 3
      %p127 = por %p125, %p126
      %p128 = scmp.ne.s32.totalorder %s119, %s120
      %p129 = scmp.eq.s32.totalorder %s25, 0
      %p130 = por %p128, %p129
      %p131 = scmp.ne.s32.totalorder %s119, %s120
      %p132 = scmp.eq.s32.totalorder %s26, 3
      %p133 = por %p131, %p132
      %p135 = scmp.ne.s32.totalorder %s120, %s134
      %p136 = scmp.eq.s32.totalorder %s26, 0
      %p137 = por %p135, %p136
      %s139 = sadd.s32 %s138, 1
      %p142 = scmp.eq.s32.totalorder %s20, 3
      %p143 = scmp.ne.s32.totalorder %s138, %s140
      %p144 = scmp.eq.s32.totalorder %s20, 0
      %p145 = por %p143, %p144
      %p146 = scmp.ne.s32.totalorder %s138, %s140
      %p147 = scmp.eq.s32.totalorder %s25, 3
      %p148 = por %p146, %p147
      %p149 = scmp.ne.s32.totalorder %s140, %s141
      %p150 = scmp.eq.s32.totalorder %s25, 0
      %p151 = por %p149, %p150
      %p152 = scmp.ne.s32.totalorder %s140, %s141
      %p153 = scmp.eq.s32.totalorder %s26, 3
      %p154 = por %p152, %p153
      %p156 = scmp.ne.s32.totalorder %s141, %s155
      %p157 = scmp.eq.s32.totalorder %s26, 0
      %p158 = por %p156, %p157
      %s159 = ssub.s32 %s20, %s27
      %p160 = scmp.eq.s32.totalorder %s159, 0
      %s162 = sadd.s32 %s161, 1
      %s163 = scalar_select %p160, %s161, %s162
      %p166 = pneg %p160
      %p167 = scmp.eq.s32.totalorder %s20, 3
      %p168 = por %p166, %p167
      %p169 = scmp.ne.s32.totalorder %s161, %s164
      %p170 = scmp.eq.s32.totalorder %s20, 0
      %p171 = por %p169, %p170
      %p172 = scmp.ne.s32.totalorder %s161, %s164
      %p173 = scmp.eq.s32.totalorder %s25, 3
      %p174 = por %p172, %p173
      %p175 = scmp.ne.s32.totalorder %s164, %s165
      %p176 = scmp.eq.s32.totalorder %s25, 0
      %p177 = por %p175, %p176
      %p178 = scmp.ne.s32.totalorder %s164, %s165
      %p179 = scmp.eq.s32.totalorder %s26, 3
      %p180 = por %p178, %p179
      %p182 = scmp.ne.s32.totalorder %s165, %s181
      %p183 = scmp.eq.s32.totalorder %s26, 0
      %p184 = por %p182, %p183
      %p185 = scmp.le.s32.totalorder 1, %s20
      %p186 = scmp.lt.s32.totalorder %s20, 5
      %p187 = pnand %p185, %p186
      %p188 = pneg %p187
      // Predicated region
      $region9: #{tpu_custom_call.1} parent=5 // pred_check
        _
      $region10: #{tpu_custom_call.1} parent=5 // pred_check_branch
        %190 = sbr.rel (%p187) target = $region12
      $region11: #{tpu_custom_call.1} parent=5 // pred_region
        %s191 = ssub.s32 %s20, 1
        // Predicated region
        $region13: #{tpu_custom_call.1} parent=11 // pred_check
          %p192 = pneg %p67
        $region14: #{tpu_custom_call.1} parent=11 // pred_check_branch
          %194 = sbr.rel (%p192) target = $region16
        $region15: #{tpu_custom_call.1} parent=11 // pred_region
          %s196 = ssub.s32 8192, 8192
          %197 = vsyncadd [#allocation6], %s196
          %s198 = sshll.u32 [#allocation5], 4
          %s199 = int_to_ptr.vmem [resolvable:$true] %s198
          %204 = dma.hbm_to_vmem [thread:$0]  %s1, 8192, %s199, [#allocation6], 128, 128, 8
        $region16: #{tpu_custom_call.1} parent=11 // pred_fallthru
          _
        // Predicated region
        $region17: #{tpu_custom_call.1} parent=11 // pred_check
          %p205 = pneg %p88
        $region18: #{tpu_custom_call.1} parent=11 // pred_check_branch
          %207 = sbr.rel (%p205) target = $region20
        $region19: #{tpu_custom_call.1} parent=11 // pred_region
          %s209 = ssub.s32 2048, 2048
          %210 = vsyncadd [#allocation6], %s209
          %s211 = sshll.u32 [#allocation7], 4
          %s212 = int_to_ptr.vmem [resolvable:$true] %s211
          %217 = dma.hbm_to_vmem [thread:$0]  %s2, 2048, %s212, [#allocation6], 64, 64, 4
        $region20: #{tpu_custom_call.1} parent=11 // pred_fallthru
          _
        // Predicated region
        $region21: #{tpu_custom_call.1} parent=11 // pred_check
          %p218 = pneg %p109
        $region22: #{tpu_custom_call.1} parent=11 // pred_check_branch
          %220 = sbr.rel (%p218) target = $region24
        $region23: #{tpu_custom_call.1} parent=11 // pred_region
          %s222 = ssub.s32 2048, 2048
          %223 = vsyncadd [#allocation9], %s222
          %s224 = sshll.u32 [#allocation8], 4
          %s225 = int_to_ptr.vmem [resolvable:$true] %s224
          %230 = dma.hbm_to_vmem [thread:$0]  %s3, 2048, %s225, [#allocation9], 128, 128, 8
        $region24: #{tpu_custom_call.1} parent=11 // pred_fallthru
          _
        // Predicated region
        $region25: #{tpu_custom_call.1} parent=11 // pred_check
          %p231 = pneg %p130
        $region26: #{tpu_custom_call.1} parent=11 // pred_check_branch
          %233 = sbr.rel (%p231) target = $region28
        $region27: #{tpu_custom_call.1} parent=11 // pred_region
          %s235 = ssub.s32 8192, 8192
          %236 = vsyncadd [#allocation9], %s235
          %s237 = sshll.u32 [#allocation10], 4
          %s238 = int_to_ptr.vmem [resolvable:$true] %s237
          %243 = dma.hbm_to_vmem [thread:$0]  %s4, 8192, %s238, [#allocation9], 256, 256, 16
        $region28: #{tpu_custom_call.1} parent=11 // pred_fallthru
          _
        // Predicated region
        $region29: #{tpu_custom_call.1} parent=11 // pred_check
          %p244 = pneg %p151
        $region30: #{tpu_custom_call.1} parent=11 // pred_check_branch
          %246 = sbr.rel (%p244) target = $region32
        $region31: #{tpu_custom_call.1} parent=11 // pred_region
          _
        $region32: #{tpu_custom_call.1} parent=11 // pred_fallthru
          _
      $region12: #{tpu_custom_call.1} parent=5 // pred_fallthru
        _
      %p247 = scmp.lt.s32.totalorder %s20, 4
      // Predicated region
      $region33: #{tpu_custom_call.1} parent=5 // pred_check
        %p248 = pneg %p247
      $region34: #{tpu_custom_call.1} parent=5 // pred_check_branch
        %250 = sbr.rel (%p248) target = $region36
      $region35: #{tpu_custom_call.1} parent=5 // pred_region
        // Predicated region
        $region37: #{tpu_custom_call.1} parent=35 // pred_check
          %p251 = pneg %p40
        $region38: #{tpu_custom_call.1} parent=35 // pred_check_branch
          %253 = sbr.rel (%p251) target = $region40
        $region39: #{tpu_custom_call.1} parent=35 // pred_region
          %s254 = sand.u32 %s30, 1
          %s255 = scalar_lea.sflag [#allocation3], %s254
          %s256 = sand.u32 %s30, 1
          %s257 = smul.addr %s256, 512
          %s258 = scalar_lea.vmem [#allocation2], %s257
          %s260 = ssub.s32 8192, 8192
          %261 = vsyncadd %s255, %s260
          %s262 = smul.addr %s20, 64
          %s263 = smul.addr %s262, 128
          %s264 = scalar_lea.hbm %s0, %s263
          %s265 = sshll.u32 %s258, 4
          %s266 = int_to_ptr.vmem [resolvable:$true] %s265
          %271 = dma.hbm_to_vmem [thread:$0]  %s264, 8192, %s266, %s255, 512, 512, 32
        $region40: #{tpu_custom_call.1} parent=35 // pred_fallthru
          _
      $region36: #{tpu_custom_call.1} parent=5 // pred_fallthru
        _
      %p272 = scmp.le.s32.totalorder 1, %s20
      %p273 = scmp.lt.s32.totalorder %s20, 5
      %p274 = pnand %p272, %p273
      %p275 = pneg %p274
      // Predicated region
      $region41: #{tpu_custom_call.1} parent=5 // pred_check
        _
      $region42: #{tpu_custom_call.1} parent=5 // pred_check_branch
        %277 = sbr.rel (%p274) target = $region44
      $region43: #{tpu_custom_call.1} parent=5 // pred_region
        %s278 = ssub.s32 %s20, 1
        %s279 = sand.u32 %s33, 1
        %s280 = scalar_lea.sflag [#allocation3], %s279
        %s281 = sand.u32 %s33, 1
        %s282 = smul.addr %s281, 512
        %s283 = scalar_lea.vmem [#allocation2], %s282
        // Predicated region
        $region45: #{tpu_custom_call.1} parent=43 // pred_check
          %p284 = pneg %p46
        $region46: #{tpu_custom_call.1} parent=43 // pred_check_branch
          %286 = sbr.rel (%p284) target = $region48
        $region47: #{tpu_custom_call.1} parent=43 // pred_region
          %287 = dma.done %s280, 8192
        $region48: #{tpu_custom_call.1} parent=43 // pred_fallthru
          _
        // Predicated region
        $region49: #{tpu_custom_call.1} parent=43 // pred_check
          %p288 = pneg %p67
        $region50: #{tpu_custom_call.1} parent=43 // pred_check_branch
          %290 = sbr.rel (%p288) target = $region52
        $region51: #{tpu_custom_call.1} parent=43 // pred_region
          %291 = dma.done [#allocation6], 8192
        $region52: #{tpu_custom_call.1} parent=43 // pred_fallthru
          _
        // Predicated region
        $region53: #{tpu_custom_call.1} parent=43 // pred_check
          %p292 = pneg %p88
        $region54: #{tpu_custom_call.1} parent=43 // pred_check_branch
          %294 = sbr.rel (%p292) target = $region56
        $region55: #{tpu_custom_call.1} parent=43 // pred_region
          %295 = dma.done [#allocation6], 2048
        $region56: #{tpu_custom_call.1} parent=43 // pred_fallthru
          _
        // Predicated region
        $region57: #{tpu_custom_call.1} parent=43 // pred_check
          %p296 = pneg %p109
        $region58: #{tpu_custom_call.1} parent=43 // pred_check_branch
          %298 = sbr.rel (%p296) target = $region60
        $region59: #{tpu_custom_call.1} parent=43 // pred_region
          %299 = dma.done [#allocation9], 2048
        $region60: #{tpu_custom_call.1} parent=43 // pred_fallthru
          _
        // Predicated region
        $region61: #{tpu_custom_call.1} parent=43 // pred_check
          %p300 = pneg %p130
        $region62: #{tpu_custom_call.1} parent=43 // pred_check_branch
          %302 = sbr.rel (%p300) target = $region64
        $region63: #{tpu_custom_call.1} parent=43 // pred_region
          %303 = dma.done [#allocation9], 8192
        $region64: #{tpu_custom_call.1} parent=43 // pred_fallthru
          _
        %s304 = sand.u32 %s33, 1
        %s305 = scalar_lea.sflag [#allocation3], %s304
        %s306 = sand.u32 %s33, 1
        %s307 = smul.addr %s306, 512
        %s308 = scalar_lea.vmem [#allocation2], %s307
        %p309 = pneg %p46
        %p310 = pneg %p43
        %p311 = pneg %p67
        %p312 = pneg %p64
        %p313 = pneg %p88
        %p314 = pneg %p85
        %p315 = pneg %p109
        %p316 = pneg %p106
        %p317 = pneg %p130
        %p318 = pneg %p127
        %p319 = pneg %p151
        %p320 = pneg %p148
        %p321 = pneg %p177
        %p322 = pneg %p174
        %s323 = sand.u32 %s164, 1
        %s324 = scalar_lea.sflag [#allocation4], %s323
        %s325 = sand.u32 %s164, 1
        %s326 = smul.addr %s325, 512
        %s327 = scalar_lea.vmem [#allocation11], %s326
        %v329 = vld [vmem:[%s283] sm:$0xff]
        %v330 = vld [vmem:[%s283 + $0x8] sm:$0xff]
        %v331 = vld [vmem:[%s283 + $0x10] sm:$0xff]
        %v332 = vld [vmem:[%s283 + $0x18] sm:$0xff]
        %v333 = vld [vmem:[%s283 + $0x20] sm:$0xff]
        %v334 = vld [vmem:[%s283 + $0x28] sm:$0xff]
        %v335 = vld [vmem:[%s283 + $0x30] sm:$0xff]
        %v336 = vld [vmem:[%s283 + $0x38] sm:$0xff]
        %v337 = vld [vmem:[%s283 + $0x40] sm:$0xff]
        %v338 = vld [vmem:[%s283 + $0x48] sm:$0xff]
        %v339 = vld [vmem:[%s283 + $0x50] sm:$0xff]
        %v340 = vld [vmem:[%s283 + $0x58] sm:$0xff]
        %v341 = vld [vmem:[%s283 + $0x60] sm:$0xff]
        %v342 = vld [vmem:[%s283 + $0x68] sm:$0xff]
        %v343 = vld [vmem:[%s283 + $0x70] sm:$0xff]
        %v344 = vld [vmem:[%s283 + $0x78] sm:$0xff]
        %v345 = vld [vmem:[%s283 + $0x80] sm:$0xff]
        %v346 = vld [vmem:[%s283 + $0x88] sm:$0xff]
        %v347 = vld [vmem:[%s283 + $0x90] sm:$0xff]
        %v348 = vld [vmem:[%s283 + $0x98] sm:$0xff]
        %v349 = vld [vmem:[%s283 + $0xa0] sm:$0xff]
        %v350 = vld [vmem:[%s283 + $0xa8] sm:$0xff]
        %v351 = vld [vmem:[%s283 + $0xb0] sm:$0xff]
        %v352 = vld [vmem:[%s283 + $0xb8] sm:$0xff]
        %v353 = vld [vmem:[%s283 + $0xc0] sm:$0xff]
        %v354 = vld [vmem:[%s283 + $0xc8] sm:$0xff]
        %v355 = vld [vmem:[%s283 + $0xd0] sm:$0xff]
        %v356 = vld [vmem:[%s283 + $0xd8] sm:$0xff]
        %v357 = vld [vmem:[%s283 + $0xe0] sm:$0xff]
        %v358 = vld [vmem:[%s283 + $0xe8] sm:$0xff]
        %v359 = vld [vmem:[%s283 + $0xf0] sm:$0xff]
        %v360 = vld [vmem:[%s283 + $0xf8] sm:$0xff]
        %v361 = vld [vmem:[%s283 + $0x100] sm:$0xff]
        %v362 = vld [vmem:[%s283 + $0x108] sm:$0xff]
        %v363 = vld [vmem:[%s283 + $0x110] sm:$0xff]
        %v364 = vld [vmem:[%s283 + $0x118] sm:$0xff]
        %v365 = vld [vmem:[%s283 + $0x120] sm:$0xff]
        %v366 = vld [vmem:[%s283 + $0x128] sm:$0xff]
        %v367 = vld [vmem:[%s283 + $0x130] sm:$0xff]
        %v368 = vld [vmem:[%s283 + $0x138] sm:$0xff]
        %v369 = vld [vmem:[%s283 + $0x140] sm:$0xff]
        %v370 = vld [vmem:[%s283 + $0x148] sm:$0xff]
        %v371 = vld [vmem:[%s283 + $0x150] sm:$0xff]
        %v372 = vld [vmem:[%s283 + $0x158] sm:$0xff]
        %v373 = vld [vmem:[%s283 + $0x160] sm:$0xff]
        %v374 = vld [vmem:[%s283 + $0x168] sm:$0xff]
        %v375 = vld [vmem:[%s283 + $0x170] sm:$0xff]
        %v376 = vld [vmem:[%s283 + $0x178] sm:$0xff]
        %v377 = vld [vmem:[%s283 + $0x180] sm:$0xff]
        %v378 = vld [vmem:[%s283 + $0x188] sm:$0xff]
        %v379 = vld [vmem:[%s283 + $0x190] sm:$0xff]
        %v380 = vld [vmem:[%s283 + $0x198] sm:$0xff]
        %v381 = vld [vmem:[%s283 + $0x1a0] sm:$0xff]
        %v382 = vld [vmem:[%s283 + $0x1a8] sm:$0xff]
        %v383 = vld [vmem:[%s283 + $0x1b0] sm:$0xff]
        %v384 = vld [vmem:[%s283 + $0x1b8] sm:$0xff]
        %v385 = vld [vmem:[%s283 + $0x1c0] sm:$0xff]
        %v386 = vld [vmem:[%s283 + $0x1c8] sm:$0xff]
        %v387 = vld [vmem:[%s283 + $0x1d0] sm:$0xff]
        %v388 = vld [vmem:[%s283 + $0x1d8] sm:$0xff]
        %v389 = vld [vmem:[%s283 + $0x1e0] sm:$0xff]
        %v390 = vld [vmem:[%s283 + $0x1e8] sm:$0xff]
        %v391 = vld [vmem:[%s283 + $0x1f0] sm:$0xff]
        %v392 = vld [vmem:[%s283 + $0x1f8] sm:$0xff]
        %v393 = vld [vmem:[%s5] sm:$0x3]
        %v394 = vld [vmem:[%s5 + $0x2] sm:$0x3]
        %v395 = vld [vmem:[%s5 + $0x4] sm:$0x3]
        %v396 = vld [vmem:[%s5 + $0x6] sm:$0x1]
        %v397 = vld [vmem:[%s5 + $0x7] sm:$0x3]
        %v398 = vld [vmem:[%s5 + $0x9] sm:$0xf]
        %v399 = vpack.c.bf16 %v333, %v329
        %v400 = vpack.c.bf16 %v334, %v330
        %v401 = vpack.c.bf16 %v335, %v331
        %v402 = vpack.c.bf16 %v336, %v332
        %v403 = vpack.c.bf16 %v341, %v337
        %v404 = vpack.c.bf16 %v342, %v338
        %v405 = vpack.c.bf16 %v343, %v339
        %v406 = vpack.c.bf16 %v344, %v340
        %v407 = vpack.c.bf16 %v349, %v345
        %v408 = vpack.c.bf16 %v350, %v346
        %v409 = vpack.c.bf16 %v351, %v347
        %v410 = vpack.c.bf16 %v352, %v348
        %v411 = vpack.c.bf16 %v357, %v353
        %v412 = vpack.c.bf16 %v358, %v354
        %v413 = vpack.c.bf16 %v359, %v355
        %v414 = vpack.c.bf16 %v360, %v356
        %v415 = vpack.c.bf16 %v365, %v361
        %v416 = vpack.c.bf16 %v366, %v362
        %v417 = vpack.c.bf16 %v367, %v363
        %v418 = vpack.c.bf16 %v368, %v364
        %v419 = vpack.c.bf16 %v373, %v369
        %v420 = vpack.c.bf16 %v374, %v370
        %v421 = vpack.c.bf16 %v375, %v371
        %v422 = vpack.c.bf16 %v376, %v372
        %v423 = vpack.c.bf16 %v381, %v377
        %v424 = vpack.c.bf16 %v382, %v378
        %v425 = vpack.c.bf16 %v383, %v379
        %v426 = vpack.c.bf16 %v384, %v380
        %v427 = vpack.c.bf16 %v389, %v385
        %v428 = vpack.c.bf16 %v390, %v386
        %v429 = vpack.c.bf16 %v391, %v387
        %v430 = vpack.c.bf16 %v392, %v388
        %v431 = vld [vmem:[#allocation5] sm:$0xff]
        %v432 = vld [vmem:[#allocation5 + $0x8] sm:$0xff]
        %v433 = vld [vmem:[#allocation5 + $0x10] sm:$0xff]
        %v434 = vld [vmem:[#allocation5 + $0x18] sm:$0xff]
        %v435 = vld [vmem:[#allocation5 + $0x20] sm:$0xff]
        %v436 = vld [vmem:[#allocation5 + $0x28] sm:$0xff]
        %v437 = vld [vmem:[#allocation5 + $0x30] sm:$0xff]
        %v438 = vld [vmem:[#allocation5 + $0x38] sm:$0xff]
        %v439 = vld [vmem:[#allocation5 + $0x40] sm:$0xff]
        %v440 = vld [vmem:[#allocation5 + $0x48] sm:$0xff]
        %v441 = vld [vmem:[#allocation5 + $0x50] sm:$0xff]
        %v442 = vld [vmem:[#allocation5 + $0x58] sm:$0xff]
        %v443 = vld [vmem:[#allocation5 + $0x60] sm:$0xff]
        %v444 = vld [vmem:[#allocation5 + $0x68] sm:$0xff]
        %v445 = vld [vmem:[#allocation5 + $0x70] sm:$0xff]
        %v446 = vld [vmem:[#allocation5 + $0x78] sm:$0xff]
        %v447 = vld [vmem:[#allocation5 + $0x80] sm:$0xff]
        %v448 = vld [vmem:[#allocation5 + $0x88] sm:$0xff]
        %v449 = vld [vmem:[#allocation5 + $0x90] sm:$0xff]
        %v450 = vld [vmem:[#allocation5 + $0x98] sm:$0xff]
        %v451 = vld [vmem:[#allocation5 + $0xa0] sm:$0xff]
        %v452 = vld [vmem:[#allocation5 + $0xa8] sm:$0xff]
        %v453 = vld [vmem:[#allocation5 + $0xb0] sm:$0xff]
        %v454 = vld [vmem:[#allocation5 + $0xb8] sm:$0xff]
        %v455 = vld [vmem:[#allocation5 + $0xc0] sm:$0xff]
        %v456 = vld [vmem:[#allocation5 + $0xc8] sm:$0xff]
        %v457 = vld [vmem:[#allocation5 + $0xd0] sm:$0xff]
        %v458 = vld [vmem:[#allocation5 + $0xd8] sm:$0xff]
        %v459 = vld [vmem:[#allocation5 + $0xe0] sm:$0xff]
        %v460 = vld [vmem:[#allocation5 + $0xe8] sm:$0xff]
        %v461 = vld [vmem:[#allocation5 + $0xf0] sm:$0xff]
        %v462 = vld [vmem:[#allocation5 + $0xf8] sm:$0xff]
        %v463 = vld [vmem:[#allocation5 + $0x100] sm:$0xff]
        %v464 = vld [vmem:[#allocation5 + $0x108] sm:$0xff]
        %v465 = vld [vmem:[#allocation5 + $0x110] sm:$0xff]
        %v466 = vld [vmem:[#allocation5 + $0x118] sm:$0xff]
        %v467 = vld [vmem:[#allocation5 + $0x120] sm:$0xff]
        %v468 = vld [vmem:[#allocation5 + $0x128] sm:$0xff]
        %v469 = vld [vmem:[#allocation5 + $0x130] sm:$0xff]
        %v470 = vld [vmem:[#allocation5 + $0x138] sm:$0xff]
        %v471 = vld [vmem:[#allocation5 + $0x140] sm:$0xff]
        %v472 = vld [vmem:[#allocation5 + $0x148] sm:$0xff]
        %v473 = vld [vmem:[#allocation5 + $0x150] sm:$0xff]
        %v474 = vld [vmem:[#allocation5 + $0x158] sm:$0xff]
        %v475 = vld [vmem:[#allocation5 + $0x160] sm:$0xff]
        %v476 = vld [vmem:[#allocation5 + $0x168] sm:$0xff]
        %v477 = vld [vmem:[#allocation5 + $0x170] sm:$0xff]
        %v478 = vld [vmem:[#allocation5 + $0x178] sm:$0xff]
        %v479 = vld [vmem:[#allocation5 + $0x180] sm:$0xff]
        %v480 = vld [vmem:[#allocation5 + $0x188] sm:$0xff]
        %v481 = vld [vmem:[#allocation5 + $0x190] sm:$0xff]
        %v482 = vld [vmem:[#allocation5 + $0x198] sm:$0xff]
        %v483 = vld [vmem:[#allocation5 + $0x1a0] sm:$0xff]
        %v484 = vld [vmem:[#allocation5 + $0x1a8] sm:$0xff]
        %v485 = vld [vmem:[#allocation5 + $0x1b0] sm:$0xff]
        %v486 = vld [vmem:[#allocation5 + $0x1b8] sm:$0xff]
        %v487 = vld [vmem:[#allocation5 + $0x1c0] sm:$0xff]
        %v488 = vld [vmem:[#allocation5 + $0x1c8] sm:$0xff]
        %v489 = vld [vmem:[#allocation5 + $0x1d0] sm:$0xff]
        %v490 = vld [vmem:[#allocation5 + $0x1d8] sm:$0xff]
        %v491 = vld [vmem:[#allocation5 + $0x1e0] sm:$0xff]
        %v492 = vld [vmem:[#allocation5 + $0x1e8] sm:$0xff]
        %v493 = vld [vmem:[#allocation5 + $0x1f0] sm:$0xff]
        %v494 = vld [vmem:[#allocation5 + $0x1f8] sm:$0xff]
        %v496 = vlaneseq
        %v497 = vshrl.u32 %v496, 7
        %v498 = vsub.s32 0, %v497
        %v499 = vrot.slane %v393, %v498
        %v500 = vlaneseq
        %v501 = vshrl.u32 %v500, 7
        %v502 = vsub.s32 1, %v501
        %v503 = vrot.slane %v393, %v502
        %v570 = vunpack.c.l.b16 %v431
        %v571 = vunpack.c.h.b16 %v431
        %v572 = vunpack.c.l.b16 %v432
        %v573 = vunpack.c.h.b16 %v432
        %v574 = vunpack.c.l.b16 %v433
        %v575 = vunpack.c.h.b16 %v433
        %v576 = vunpack.c.l.b16 %v434
        %v577 = vunpack.c.h.b16 %v434
        %v578 = vunpack.c.l.b16 %v435
        %v579 = vunpack.c.h.b16 %v435
        %v580 = vunpack.c.l.b16 %v436
        %v581 = vunpack.c.h.b16 %v436
        %v582 = vunpack.c.l.b16 %v437
        %v583 = vunpack.c.h.b16 %v437
        %v584 = vunpack.c.l.b16 %v438
        %v585 = vunpack.c.h.b16 %v438
        %v586 = vunpack.c.l.b16 %v439
        %v587 = vunpack.c.h.b16 %v439
        %v588 = vunpack.c.l.b16 %v440
        %v589 = vunpack.c.h.b16 %v440
        %v590 = vunpack.c.l.b16 %v441
        %v591 = vunpack.c.h.b16 %v441
        %v592 = vunpack.c.l.b16 %v442
        %v593 = vunpack.c.h.b16 %v442
        %v594 = vunpack.c.l.b16 %v443
        %v595 = vunpack.c.h.b16 %v443
        %v596 = vunpack.c.l.b16 %v444
        %v597 = vunpack.c.h.b16 %v444
        %v598 = vunpack.c.l.b16 %v445
        %v599 = vunpack.c.h.b16 %v445
        %v600 = vunpack.c.l.b16 %v446
        %v601 = vunpack.c.h.b16 %v446
        %v602 = vunpack.c.l.b16 %v447
        %v603 = vunpack.c.h.b16 %v447
        %v604 = vunpack.c.l.b16 %v448
        %v605 = vunpack.c.h.b16 %v448
        %v606 = vunpack.c.l.b16 %v449
        %v607 = vunpack.c.h.b16 %v449
        %v608 = vunpack.c.l.b16 %v450
        %v609 = vunpack.c.h.b16 %v450
        %v610 = vunpack.c.l.b16 %v451
        %v611 = vunpack.c.h.b16 %v451
        %v612 = vunpack.c.l.b16 %v452
        %v613 = vunpack.c.h.b16 %v452
        %v614 = vunpack.c.l.b16 %v453
        %v615 = vunpack.c.h.b16 %v453
        %v616 = vunpack.c.l.b16 %v454
        %v617 = vunpack.c.h.b16 %v454
        %v618 = vunpack.c.l.b16 %v455
        %v619 = vunpack.c.h.b16 %v455
        %v620 = vunpack.c.l.b16 %v456
        %v621 = vunpack.c.h.b16 %v456
        %v622 = vunpack.c.l.b16 %v457
        %v623 = vunpack.c.h.b16 %v457
        %v624 = vunpack.c.l.b16 %v458
        %v625 = vunpack.c.h.b16 %v458
        %v626 = vunpack.c.l.b16 %v459
        %v627 = vunpack.c.h.b16 %v459
        %v628 = vunpack.c.l.b16 %v460
        %v629 = vunpack.c.h.b16 %v460
        %v630 = vunpack.c.l.b16 %v461
        %v631 = vunpack.c.h.b16 %v461
        %v632 = vunpack.c.l.b16 %v462
        %v633 = vunpack.c.h.b16 %v462
        %v634 = vunpack.c.l.b16 %v463
        %v635 = vunpack.c.h.b16 %v463
        %v636 = vunpack.c.l.b16 %v464
        %v637 = vunpack.c.h.b16 %v464
        %v638 = vunpack.c.l.b16 %v465
        %v639 = vunpack.c.h.b16 %v465
        %v640 = vunpack.c.l.b16 %v466
        %v641 = vunpack.c.h.b16 %v466
        %v642 = vunpack.c.l.b16 %v467
        %v643 = vunpack.c.h.b16 %v467
        %v644 = vunpack.c.l.b16 %v468
        %v645 = vunpack.c.h.b16 %v468
        %v646 = vunpack.c.l.b16 %v469
        %v647 = vunpack.c.h.b16 %v469
        %v648 = vunpack.c.l.b16 %v470
        %v649 = vunpack.c.h.b16 %v470
        %v650 = vunpack.c.l.b16 %v471
        %v651 = vunpack.c.h.b16 %v471
        %v652 = vunpack.c.l.b16 %v472
        %v653 = vunpack.c.h.b16 %v472
        %v654 = vunpack.c.l.b16 %v473
        %v655 = vunpack.c.h.b16 %v473
        %v656 = vunpack.c.l.b16 %v474
        %v657 = vunpack.c.h.b16 %v474
        %v658 = vunpack.c.l.b16 %v475
        %v659 = vunpack.c.h.b16 %v475
        %v660 = vunpack.c.l.b16 %v476
        %v661 = vunpack.c.h.b16 %v476
        %v662 = vunpack.c.l.b16 %v477
        %v663 = vunpack.c.h.b16 %v477
        %v664 = vunpack.c.l.b16 %v478
        %v665 = vunpack.c.h.b16 %v478
        %v666 = vunpack.c.l.b16 %v479
        %v667 = vunpack.c.h.b16 %v479
        %v668 = vunpack.c.l.b16 %v480
        %v669 = vunpack.c.h.b16 %v480
        %v670 = vunpack.c.l.b16 %v481
        %v671 = vunpack.c.h.b16 %v481
        %v672 = vunpack.c.l.b16 %v482
        %v673 = vunpack.c.h.b16 %v482
        %v674 = vunpack.c.l.b16 %v483
        %v675 = vunpack.c.h.b16 %v483
        %v676 = vunpack.c.l.b16 %v484
        %v677 = vunpack.c.h.b16 %v484
        %v678 = vunpack.c.l.b16 %v485
        %v679 = vunpack.c.h.b16 %v485
        %v680 = vunpack.c.l.b16 %v486
        %v681 = vunpack.c.h.b16 %v486
        %v682 = vunpack.c.l.b16 %v487
        %v683 = vunpack.c.h.b16 %v487
        %v684 = vunpack.c.l.b16 %v488
        %v685 = vunpack.c.h.b16 %v488
        %v686 = vunpack.c.l.b16 %v489
        %v687 = vunpack.c.h.b16 %v489
        %v688 = vunpack.c.l.b16 %v490
        %v689 = vunpack.c.h.b16 %v490
        %v690 = vunpack.c.l.b16 %v491
        %v691 = vunpack.c.h.b16 %v491
        %v692 = vunpack.c.l.b16 %v492
        %v693 = vunpack.c.h.b16 %v492
        %v694 = vunpack.c.l.b16 %v493
        %v695 = vunpack.c.h.b16 %v493
        %v696 = vunpack.c.l.b16 %v494
        %v697 = vunpack.c.h.b16 %v494
        %v698 = vpack.c.b16 %v572, %v570
        %v699 = vpack.c.b16 %v573, %v571
        %v700 = vpack.c.b16 %v576, %v574
        %v701 = vpack.c.b16 %v577, %v575
        %v702 = vpack.c.b16 %v580, %v578
        %v703 = vpack.c.b16 %v581, %v579
        %v704 = vpack.c.b16 %v584, %v582
        %v705 = vpack.c.b16 %v585, %v583
        %v706 = vpack.c.b16 %v588, %v586
        %v707 = vpack.c.b16 %v589, %v587
        %v708 = vpack.c.b16 %v592, %v590
        %v709 = vpack.c.b16 %v593, %v591
        %v710 = vpack.c.b16 %v596, %v594
        %v711 = vpack.c.b16 %v597, %v595
        %v712 = vpack.c.b16 %v600, %v598
        %v713 = vpack.c.b16 %v601, %v599
        %v714 = vpack.c.b16 %v604, %v602
        %v715 = vpack.c.b16 %v605, %v603
        %v716 = vpack.c.b16 %v608, %v606
        %v717 = vpack.c.b16 %v609, %v607
        %v718 = vpack.c.b16 %v612, %v610
        %v719 = vpack.c.b16 %v613, %v611
        %v720 = vpack.c.b16 %v616, %v614
        %v721 = vpack.c.b16 %v617, %v615
        %v722 = vpack.c.b16 %v620, %v618
        %v723 = vpack.c.b16 %v621, %v619
        %v724 = vpack.c.b16 %v624, %v622
        %v725 = vpack.c.b16 %v625, %v623
        %v726 = vpack.c.b16 %v628, %v626
        %v727 = vpack.c.b16 %v629, %v627
        %v728 = vpack.c.b16 %v632, %v630
        %v729 = vpack.c.b16 %v633, %v631
        %v730 = vpack.c.b16 %v636, %v634
        %v731 = vpack.c.b16 %v637, %v635
        %v732 = vpack.c.b16 %v640, %v638
        %v733 = vpack.c.b16 %v641, %v639
        %v734 = vpack.c.b16 %v644, %v642
        %v735 = vpack.c.b16 %v645, %v643
        %v736 = vpack.c.b16 %v648, %v646
        %v737 = vpack.c.b16 %v649, %v647
        %v738 = vpack.c.b16 %v652, %v650
        %v739 = vpack.c.b16 %v653, %v651
        %v740 = vpack.c.b16 %v656, %v654
        %v741 = vpack.c.b16 %v657, %v655
        %v742 = vpack.c.b16 %v660, %v658
        %v743 = vpack.c.b16 %v661, %v659
        %v744 = vpack.c.b16 %v664, %v662
        %v745 = vpack.c.b16 %v665, %v663
        %v746 = vpack.c.b16 %v668, %v666
        %v747 = vpack.c.b16 %v669, %v667
        %v748 = vpack.c.b16 %v672, %v670
        %v749 = vpack.c.b16 %v673, %v671
        %v750 = vpack.c.b16 %v676, %v674
        %v751 = vpack.c.b16 %v677, %v675
        %v752 = vpack.c.b16 %v680, %v678
        %v753 = vpack.c.b16 %v681, %v679
        %v754 = vpack.c.b16 %v684, %v682
        %v755 = vpack.c.b16 %v685, %v683
        %v756 = vpack.c.b16 %v688, %v686
        %v757 = vpack.c.b16 %v689, %v687
        %v758 = vpack.c.b16 %v692, %v690
        %v759 = vpack.c.b16 %v693, %v691
        %v760 = vpack.c.b16 %v696, %v694
        %v761 = vpack.c.b16 %v697, %v695
        %826 = vmatprep.subr.bf16.mxu0 %v699
        %827 = vmatpush1.bf16.msra.mxu0 %v698
        %828 = vmatprep.subr.bf16.mxu0 %v701
        %829 = vmatpush1.bf16.msra.mxu0 %v700
        %830 = vmatprep.subr.bf16.mxu0 %v703
        %831 = vmatpush1.bf16.msra.mxu0 %v702
        %832 = vmatprep.subr.bf16.mxu0 %v705
        %833 = vmatpush1.bf16.msra.mxu0 %v704
        %834 = vmatprep.subr.bf16.mxu0 %v707
        %835 = vmatpush1.bf16.msra.mxu0 %v706
        %836 = vmatprep.subr.bf16.mxu0 %v709
        %837 = vmatpush1.bf16.msra.mxu0 %v708
        %838 = vmatprep.subr.bf16.mxu0 %v711
        %839 = vmatpush1.bf16.msra.mxu0 %v710
        %840 = vmatprep.subr.bf16.mxu0 %v713
        %841 = vmatpush1.bf16.msra.mxu0 %v712
        %842 = vmatprep.subr.bf16.mxu0 %v715
        %843 = vmatpush1.bf16.msra.mxu0 %v714
        %844 = vmatprep.subr.bf16.mxu0 %v717
        %845 = vmatpush1.bf16.msra.mxu0 %v716
        %846 = vmatprep.subr.bf16.mxu0 %v719
        %847 = vmatpush1.bf16.msra.mxu0 %v718
        %848 = vmatprep.subr.bf16.mxu0 %v721
        %849 = vmatpush1.bf16.msra.mxu0 %v720
        %850 = vmatprep.subr.bf16.mxu0 %v723
        %851 = vmatpush1.bf16.msra.mxu0 %v722
        %852 = vmatprep.subr.bf16.mxu0 %v725
        %853 = vmatpush1.bf16.msra.mxu0 %v724
        %854 = vmatprep.subr.bf16.mxu0 %v727
        %855 = vmatpush1.bf16.msra.mxu0 %v726
        %856 = vmatprep.subr.bf16.mxu0 %v729
        %857 = vmatpush1.bf16.msra.mxu0 %v728
        %858 = vmatprep.mubr.bf16.mxu0 %v400
        %859 = vmatmul.mubr.bf16.gmra.mrb[0].mxu0 %v399
        %v860 = vpop.f32.mrb[0].mxu0
        %v861 = vadd.f32 %v499, %v860
        %v862 = vpop.f32.mrb[0].mxu0
        %v863 = vadd.f32 %v503, %v862
        %v864 = vpop.f32.mrb[0].mxu0
        %v865 = vadd.f32 %v499, %v864
        %v866 = vpop.f32.mrb[0].mxu0
        %v867 = vadd.f32 %v503, %v866
        %868 = vmatprep.mubr.bf16.mxu0 %v404
        %869 = vmatmul.mubr.bf16.gmra.mrb[0].mxu0 %v403
        %v870 = vpop.f32.mrb[0].mxu0
        %v871 = vadd.f32 %v499, %v870
        %v872 = vpop.f32.mrb[0].mxu0
        %v873 = vadd.f32 %v503, %v872
        %v874 = vpop.f32.mrb[0].mxu0
        %v875 = vadd.f32 %v499, %v874
        %v876 = vpop.f32.mrb[0].mxu0
        %v877 = vadd.f32 %v503, %v876
        %878 = vmatprep.mubr.bf16.mxu0 %v408
        %879 = vmatmul.mubr.bf16.gmra.mrb[0].mxu0 %v407
        %v880 = vpop.f32.mrb[0].mxu0
        %v881 = vadd.f32 %v499, %v880
        %v882 = vpop.f32.mrb[0].mxu0
        %v883 = vadd.f32 %v503, %v882
        %v884 = vpop.f32.mrb[0].mxu0
        %v885 = vadd.f32 %v499, %v884
        %v886 = vpop.f32.mrb[0].mxu0
        %v887 = vadd.f32 %v503, %v886
        %888 = vmatprep.mubr.bf16.mxu0 %v412
        %889 = vmatmul.mubr.bf16.gmra.mrb[0].mxu0 %v411
        %v890 = vpop.f32.mrb[0].mxu0
        %v891 = vadd.f32 %v499, %v890
        %v892 = vpop.f32.mrb[0].mxu0
        %v893 = vadd.f32 %v503, %v892
        %v894 = vpop.f32.mrb[0].mxu0
        %v895 = vadd.f32 %v499, %v894
        %v896 = vpop.f32.mrb[0].mxu0
        %v897 = vadd.f32 %v503, %v896
        %898 = vmatprep.mubr.bf16.mxu0 %v416
        %899 = vmatmul.mubr.bf16.gmra.mrb[0].mxu0 %v415
        %v900 = vpop.f32.mrb[0].mxu0
        %v901 = vadd.f32 %v499, %v900
        %v902 = vpop.f32.mrb[0].mxu0
        %v903 = vadd.f32 %v503, %v902
        %v904 = vpop.f32.mrb[0].mxu0
        %v905 = vadd.f32 %v499, %v904
        %v906 = vpop.f32.mrb[0].mxu0
        %v907 = vadd.f32 %v503, %v906
        %908 = vmatprep.mubr.bf16.mxu0 %v420
        %909 = vmatmul.mubr.bf16.gmra.mrb[0].mxu0 %v419
        %v910 = vpop.f32.mrb[0].mxu0
        %v911 = vadd.f32 %v499, %v910
        %v912 = vpop.f32.mrb[0].mxu0
        %v913 = vadd.f32 %v503, %v912
        %v914 = vpop.f32.mrb[0].mxu0
        %v915 = vadd.f32 %v499, %v914
        %v916 = vpop.f32.mrb[0].mxu0
        %v917 = vadd.f32 %v503, %v916
        %918 = vmatprep.mubr.bf16.mxu0 %v424
        %919 = vmatmul.mubr.bf16.gmra.mrb[0].mxu0 %v423
        %v920 = vpop.f32.mrb[0].mxu0
        %v921 = vadd.f32 %v499, %v920
        %v922 = vpop.f32.mrb[0].mxu0
        %v923 = vadd.f32 %v503, %v922
        %v924 = vpop.f32.mrb[0].mxu0
        %v925 = vadd.f32 %v499, %v924
        %v926 = vpop.f32.mrb[0].mxu0
        %v927 = vadd.f32 %v503, %v926
        %928 = vmatprep.mubr.bf16.mxu0 %v428
        %929 = vmatmul.mubr.bf16.gmra.mrb[0].mxu0 %v427
        %v930 = vpop.f32.mrb[0].mxu0
        %v931 = vadd.f32 %v499, %v930
        %v932 = vpop.f32.mrb[0].mxu0
        %v933 = vadd.f32 %v503, %v932
        %v934 = vpop.f32.mrb[0].mxu0
        %v935 = vadd.f32 %v499, %v934
        %v936 = vpop.f32.mrb[0].mxu0
        %v937 = vadd.f32 %v503, %v936
        %938 = vdwg.mxu0
        %939 = vmatprep.subr.bf16.mxu0 %v731
        %940 = vmatpush1.bf16.msra.mxu0 %v730
        %941 = vmatprep.subr.bf16.mxu0 %v733
        %942 = vmatpush1.bf16.msra.mxu0 %v732
        %943 = vmatprep.subr.bf16.mxu0 %v735
        %944 = vmatpush1.bf16.msra.mxu0 %v734
        %945 = vmatprep.subr.bf16.mxu0 %v737
        %946 = vmatpush1.bf16.msra.mxu0 %v736
        %947 = vmatprep.subr.bf16.mxu0 %v739
        %948 = vmatpush1.bf16.msra.mxu0 %v738
        %949 = vmatprep.subr.bf16.mxu0 %v741
        %950 = vmatpush1.bf16.msra.mxu0 %v740
        %951 = vmatprep.subr.bf16.mxu0 %v743
        %952 = vmatpush1.bf16.msra.mxu0 %v742
        %953 = vmatprep.subr.bf16.mxu0 %v745
        %954 = vmatpush1.bf16.msra.mxu0 %v744
        %955 = vmatprep.subr.bf16.mxu0 %v747
        %956 = vmatpush1.bf16.msra.mxu0 %v746
        %957 = vmatprep.subr.bf16.mxu0 %v749
        %958 = vmatpush1.bf16.msra.mxu0 %v748
        %959 = vmatprep.subr.bf16.mxu0 %v751
        %960 = vmatpush1.bf16.msra.mxu0 %v750
        %961 = vmatprep.subr.bf16.mxu0 %v753
        %962 = vmatpush1.bf16.msra.mxu0 %v752
        %963 = vmatprep.subr.bf16.mxu0 %v755
        %964 = vmatpush1.bf16.msra.mxu0 %v754
        %965 = vmatprep.subr.bf16.mxu0 %v757
        %966 = vmatpush1.bf16.msra.mxu0 %v756
        %967 = vmatprep.subr.bf16.mxu0 %v759
        %968 = vmatpush1.bf16.msra.mxu0 %v758
        %969 = vmatprep.subr.bf16.mxu0 %v761
        %970 = vmatpush1.bf16.msra.mxu0 %v760
        %971 = vmatprep.mubr.bf16.mxu0 %v402
        %972 = vmatmul.mubr.bf16.gmra.mrb[0].mxu0 %v401
        %v973 = vpop.f32.mrb[0].mxu0
        %v974 = vadd.f32 %v861, %v973
        %v975 = vpop.f32.mrb[0].mxu0
        %v976 = vadd.f32 %v863, %v975
        %v977 = vpop.f32.mrb[0].mxu0
        %v978 = vadd.f32 %v865, %v977
        %v979 = vpop.f32.mrb[0].mxu0
        %v980 = vadd.f32 %v867, %v979
        %981 = vmatprep.mubr.bf16.mxu0 %v406
        %982 = vmatmul.mubr.bf16.gmra.mrb[0].mxu0 %v405
        %v983 = vpop.f32.mrb[0].mxu0
        %v984 = vadd.f32 %v871, %v983
        %v985 = vpop.f32.mrb[0].mxu0
        %v986 = vadd.f32 %v873, %v985
        %v987 = vpop.f32.mrb[0].mxu0
        %v988 = vadd.f32 %v875, %v987
        %v989 = vpop.f32.mrb[0].mxu0
        %v990 = vadd.f32 %v877, %v989
        %991 = vmatprep.mubr.bf16.mxu0 %v410
        %992 = vmatmul.mubr.bf16.gmra.mrb[0].mxu0 %v409
        %v993 = vpop.f32.mrb[0].mxu0
        %v994 = vadd.f32 %v881, %v993
        %v995 = vpop.f32.mrb[0].mxu0
        %v996 = vadd.f32 %v883, %v995
        %v997 = vpop.f32.mrb[0].mxu0
        %v998 = vadd.f32 %v885, %v997
        %v999 = vpop.f32.mrb[0].mxu0
        %v1000 = vadd.f32 %v887, %v999
        %1001 = vmatprep.mubr.bf16.mxu0 %v414
        %1002 = vmatmul.mubr.bf16.gmra.mrb[0].mxu0 %v413
        %v1003 = vpop.f32.mrb[0].mxu0
        %v1004 = vadd.f32 %v891, %v1003
        %v1005 = vpop.f32.mrb[0].mxu0
        %v1006 = vadd.f32 %v893, %v1005
        %v1007 = vpop.f32.mrb[0].mxu0
        %v1008 = vadd.f32 %v895, %v1007
        %v1009 = vpop.f32.mrb[0].mxu0
        %v1010 = vadd.f32 %v897, %v1009
        %1011 = vmatprep.mubr.bf16.mxu0 %v418
        %1012 = vmatmul.mubr.bf16.gmra.mrb[0].mxu0 %v417
        %v1013 = vpop.f32.mrb[0].mxu0
        %v1014 = vadd.f32 %v901, %v1013
        %v1015 = vpop.f32.mrb[0].mxu0
        %v1016 = vadd.f32 %v903, %v1015
        %v1017 = vpop.f32.mrb[0].mxu0
        %v1018 = vadd.f32 %v905, %v1017
        %v1019 = vpop.f32.mrb[0].mxu0
        %v1020 = vadd.f32 %v907, %v1019
        %1021 = vmatprep.mubr.bf16.mxu0 %v422
        %1022 = vmatmul.mubr.bf16.gmra.mrb[0].mxu0 %v421
        %v1023 = vpop.f32.mrb[0].mxu0
        %v1024 = vadd.f32 %v911, %v1023
        %v1025 = vpop.f32.mrb[0].mxu0
        %v1026 = vadd.f32 %v913, %v1025
        %v1027 = vpop.f32.mrb[0].mxu0
        %v1028 = vadd.f32 %v915, %v1027
        %v1029 = vpop.f32.mrb[0].mxu0
        %v1030 = vadd.f32 %v917, %v1029
        %1031 = vmatprep.mubr.bf16.mxu0 %v426
        %1032 = vmatmul.mubr.bf16.gmra.mrb[0].mxu0 %v425
        %v1033 = vpop.f32.mrb[0].mxu0
        %v1034 = vadd.f32 %v921, %v1033
        %v1035 = vpop.f32.mrb[0].mxu0
        %v1036 = vadd.f32 %v923, %v1035
        %v1037 = vpop.f32.mrb[0].mxu0
        %v1038 = vadd.f32 %v925, %v1037
        %v1039 = vpop.f32.mrb[0].mxu0
        %v1040 = vadd.f32 %v927, %v1039
        %1041 = vmatprep.mubr.bf16.mxu0 %v430
        %1042 = vmatmul.mubr.bf16.gmra.mrb[0].mxu0 %v429
        %v1043 = vpop.f32.mrb[0].mxu0
        %v1044 = vadd.f32 %v931, %v1043
        %v1045 = vpop.f32.mrb[0].mxu0
        %v1046 = vadd.f32 %v933, %v1045
        %v1047 = vpop.f32.mrb[0].mxu0
        %v1048 = vadd.f32 %v935, %v1047
        %v1049 = vpop.f32.mrb[0].mxu0
        %v1050 = vadd.f32 %v937, %v1049
        %1051 = vdwg.mxu0
        %v1052 = vmul.f32 %v974, %v974
        %v1053 = vmul.f32 %v976, %v976
        %v1054 = vmul.f32 %v978, %v978
        %v1055 = vmul.f32 %v980, %v980
        %v1056 = vmul.f32 %v984, %v984
        %v1057 = vmul.f32 %v986, %v986
        %v1058 = vmul.f32 %v988, %v988
        %v1059 = vmul.f32 %v990, %v990
        %v1060 = vmul.f32 %v994, %v994
        %v1061 = vmul.f32 %v996, %v996
        %v1062 = vmul.f32 %v998, %v998
        %v1063 = vmul.f32 %v1000, %v1000
        %v1064 = vmul.f32 %v1004, %v1004
        %v1065 = vmul.f32 %v1006, %v1006
        %v1066 = vmul.f32 %v1008, %v1008
        %v1067 = vmul.f32 %v1010, %v1010
        %v1068 = vmul.f32 %v1014, %v1014
        %v1069 = vmul.f32 %v1016, %v1016
        %v1070 = vmul.f32 %v1018, %v1018
        %v1071 = vmul.f32 %v1020, %v1020
        %v1072 = vmul.f32 %v1024, %v1024
        %v1073 = vmul.f32 %v1026, %v1026
        %v1074 = vmul.f32 %v1028, %v1028
        %v1075 = vmul.f32 %v1030, %v1030
        %v1076 = vmul.f32 %v1034, %v1034
        %v1077 = vmul.f32 %v1036, %v1036
        %v1078 = vmul.f32 %v1038, %v1038
        %v1079 = vmul.f32 %v1040, %v1040
        %v1080 = vmul.f32 %v1044, %v1044
        %v1081 = vmul.f32 %v1046, %v1046
        %v1082 = vmul.f32 %v1048, %v1048
        %v1083 = vmul.f32 %v1050, %v1050
        %v1084 = vadd.f32 %v974, %v978
        %v1085 = vadd.f32 %v1084, %v984
        %v1086 = vadd.f32 %v1085, %v988
        %v1087 = vadd.f32 %v1086, %v994
        %v1088 = vadd.f32 %v1087, %v998
        %v1089 = vadd.f32 %v1088, %v1004
        %v1090 = vadd.f32 %v1089, %v1008
        %v1091 = vadd.f32 %v1090, %v1014
        %v1092 = vadd.f32 %v1091, %v1018
        %v1093 = vadd.f32 %v1092, %v1024
        %v1094 = vadd.f32 %v1093, %v1028
        %v1095 = vadd.f32 %v1094, %v1034
        %v1096 = vadd.f32 %v1095, %v1038
        %v1097 = vadd.f32 %v1096, %v1044
        %v1098 = vadd.f32 %v1097, %v1048
        %v1099 = vrot.slane %v1098, 4
        %v1100 = vadd.f32 %v1098, %v1099
        %v1101 = vrot.slane %v1100, 2
        %v1102 = vadd.f32 %v1100, %v1101
        %v1103 = vrot.slane %v1102, 1
        %v1104 = vadd.f32 %v1102, %v1103
        %v1105 = vadd.f32 %v976, %v980
        %v1106 = vadd.f32 %v1105, %v986
        %v1107 = vadd.f32 %v1106, %v990
        %v1108 = vadd.f32 %v1107, %v996
        %v1109 = vadd.f32 %v1108, %v1000
        %v1110 = vadd.f32 %v1109, %v1006
        %v1111 = vadd.f32 %v1110, %v1010
        %v1112 = vadd.f32 %v1111, %v1016
        %v1113 = vadd.f32 %v1112, %v1020
        %v1114 = vadd.f32 %v1113, %v1026
        %v1115 = vadd.f32 %v1114, %v1030
        %v1116 = vadd.f32 %v1115, %v1036
        %v1117 = vadd.f32 %v1116, %v1040
        %v1118 = vadd.f32 %v1117, %v1046
        %v1119 = vadd.f32 %v1118, %v1050
        %v1120 = vrot.slane %v1119, 4
        %v1121 = vadd.f32 %v1119, %v1120
        %v1122 = vrot.slane %v1121, 2
        %v1123 = vadd.f32 %v1121, %v1122
        %v1124 = vrot.slane %v1123, 1
        %v1125 = vadd.f32 %v1123, %v1124
        %v1126 = vadd.f32 %v1052, %v1054
        %v1127 = vadd.f32 %v1126, %v1056
        %v1128 = vadd.f32 %v1127, %v1058
        %v1129 = vadd.f32 %v1128, %v1060
        %v1130 = vadd.f32 %v1129, %v1062
        %v1131 = vadd.f32 %v1130, %v1064
        %v1132 = vadd.f32 %v1131, %v1066
        %v1133 = vadd.f32 %v1132, %v1068
        %v1134 = vadd.f32 %v1133, %v1070
        %v1135 = vadd.f32 %v1134, %v1072
        %v1136 = vadd.f32 %v1135, %v1074
        %v1137 = vadd.f32 %v1136, %v1076
        %v1138 = vadd.f32 %v1137, %v1078
        %v1139 = vadd.f32 %v1138, %v1080
        %v1140 = vadd.f32 %v1139, %v1082
        %v1141 = vrot.slane %v1140, 4
        %v1142 = vadd.f32 %v1140, %v1141
        %v1143 = vrot.slane %v1142, 2
        %v1144 = vadd.f32 %v1142, %v1143
        %v1145 = vrot.slane %v1144, 1
        %v1146 = vadd.f32 %v1144, %v1145
        %v1147 = vadd.f32 %v1053, %v1055
        %v1148 = vadd.f32 %v1147, %v1057
        %v1149 = vadd.f32 %v1148, %v1059
        %v1150 = vadd.f32 %v1149, %v1061
        %v1151 = vadd.f32 %v1150, %v1063
        %v1152 = vadd.f32 %v1151, %v1065
        %v1153 = vadd.f32 %v1152, %v1067
        %v1154 = vadd.f32 %v1153, %v1069
        %v1155 = vadd.f32 %v1154, %v1071
        %v1156 = vadd.f32 %v1155, %v1073
        %v1157 = vadd.f32 %v1156, %v1075
        %v1158 = vadd.f32 %v1157, %v1077
        %v1159 = vadd.f32 %v1158, %v1079
        %v1160 = vadd.f32 %v1159, %v1081
        %v1161 = vadd.f32 %v1160, %v1083
        %v1162 = vrot.slane %v1161, 4
        %v1163 = vadd.f32 %v1161, %v1162
        %v1164 = vrot.slane %v1163, 2
        %v1165 = vadd.f32 %v1163, %v1164
        %v1166 = vrot.slane %v1165, 1
        %v1167 = vadd.f32 %v1165, %v1166
        %v1168 = vmul.f32 %v1104, 0.0078125
        %v1169 = vmul.f32 %v1125, 0.0078125
        %v1170 = vmul.f32 %v1146, 0.0078125
        %v1171 = vmul.f32 %v1167, 0.0078125
        %v1172 = vmul.f32 %v1168, %v1168
        %v1173 = vmul.f32 %v1169, %v1169
        %v1174 = vsub.f32 %v1170, %v1172
        %v1175 = vsub.f32 %v1171, %v1173
        %v1176 = vmax.f32 %v1174, 0.0
        %v1177 = vmax.f32 %v1175, 0.0
        %v1178 = vadd.f32 %v1176, 1e-05
        %v1179 = vadd.f32 %v1177, 1e-05
        %v1180 = vrsqrt.pop %v1178
        %v1181 = vrsqrt.pop %v1179
        %v1184 = vcombine.low %v1180, %v1181
        %v1186 = vunpack.c.l.s4 1966171168
        %v1187 = vunpack.c.0.s8 %v1186
        %v1188 = vlaneseq
        %v1189 = vshrl.u32 %v1188, 7
        %v1190 = vsub.s32 %v1187, %v1189
        %v1191 = vrot.slane %v1184, %v1190
        %v1193 = vunpack.c.l.s4 1966171168
        %v1194 = vunpack.c.0.s8 %v1193
        %v1195 = vlaneseq
        %v1196 = vshrl.u32 %v1195, 7
        %v1197 = vsub.s32 %v1194, %v1196
        %v1198 = vrot.slane %v1191, %v1197
        %v1200 = vmul.f32 %v394, %v1198
        %v1202 = vlaneseq
        %v1203 = vshrl.u32 %v1202, 7
        %v1204 = vsub.s32 0, %v1203
        %v1205 = vrot.slane %v1200, %v1204
        %v1206 = vlaneseq
        %v1207 = vshrl.u32 %v1206, 7
        %v1208 = vsub.s32 1, %v1207
        %v1209 = vrot.slane %v1200, %v1208
        %v1212 = vmul.f32 %v1168, %v1205
        %v1213 = vmul.f32 %v1169, %v1209
        %v1216 = vcombine.low %v1212, %v1213
        %v1218 = vunpack.c.l.s4 1966171168
        %v1219 = vunpack.c.0.s8 %v1218
        %v1220 = vlaneseq
        %v1221 = vshrl.u32 %v1220, 7
        %v1222 = vsub.s32 %v1219, %v1221
        %v1223 = vrot.slane %v1216, %v1222
        %v1225 = vunpack.c.l.s4 1966171168
        %v1226 = vunpack.c.0.s8 %v1225
        %v1227 = vlaneseq
        %v1228 = vshrl.u32 %v1227, 7
        %v1229 = vsub.s32 %v1226, %v1228
        %v1230 = vrot.slane %v1223, %v1229
        %v1232 = vsub.f32 %v395, %v1230
        %v1233 = vmul.f32 %v974, %v1205
        %v1234 = vmul.f32 %v976, %v1209
        %v1235 = vmul.f32 %v978, %v1205
        %v1236 = vmul.f32 %v980, %v1209
        %v1237 = vmul.f32 %v984, %v1205
        %v1238 = vmul.f32 %v986, %v1209
        %v1239 = vmul.f32 %v988, %v1205
        %v1240 = vmul.f32 %v990, %v1209
        %v1241 = vmul.f32 %v994, %v1205
        %v1242 = vmul.f32 %v996, %v1209
        %v1243 = vmul.f32 %v998, %v1205
        %v1244 = vmul.f32 %v1000, %v1209
        %v1245 = vmul.f32 %v1004, %v1205
        %v1246 = vmul.f32 %v1006, %v1209
        %v1247 = vmul.f32 %v1008, %v1205
        %v1248 = vmul.f32 %v1010, %v1209
        %v1249 = vmul.f32 %v1014, %v1205
        %v1250 = vmul.f32 %v1016, %v1209
        %v1251 = vmul.f32 %v1018, %v1205
        %v1252 = vmul.f32 %v1020, %v1209
        %v1253 = vmul.f32 %v1024, %v1205
        %v1254 = vmul.f32 %v1026, %v1209
        %v1255 = vmul.f32 %v1028, %v1205
        %v1256 = vmul.f32 %v1030, %v1209
        %v1257 = vmul.f32 %v1034, %v1205
        %v1258 = vmul.f32 %v1036, %v1209
        %v1259 = vmul.f32 %v1038, %v1205
        %v1260 = vmul.f32 %v1040, %v1209
        %v1261 = vmul.f32 %v1044, %v1205
        %v1262 = vmul.f32 %v1046, %v1209
        %v1263 = vmul.f32 %v1048, %v1205
        %v1264 = vmul.f32 %v1050, %v1209
        %v1266 = vlaneseq
        %v1267 = vshrl.u32 %v1266, 7
        %v1268 = vsub.s32 0, %v1267
        %v1269 = vrot.slane %v1232, %v1268
        %v1270 = vlaneseq
        %v1271 = vshrl.u32 %v1270, 7
        %v1272 = vsub.s32 1, %v1271
        %v1273 = vrot.slane %v1232, %v1272
        %v1276 = vadd.f32 %v1233, %v1269
        %v1277 = vadd.f32 %v1234, %v1273
        %v1278 = vadd.f32 %v1235, %v1269
        %v1279 = vadd.f32 %v1236, %v1273
        %v1280 = vadd.f32 %v1237, %v1269
        %v1281 = vadd.f32 %v1238, %v1273
        %v1282 = vadd.f32 %v1239, %v1269
        %v1283 = vadd.f32 %v1240, %v1273
        %v1284 = vadd.f32 %v1241, %v1269
        %v1285 = vadd.f32 %v1242, %v1273
        %v1286 = vadd.f32 %v1243, %v1269
        %v1287 = vadd.f32 %v1244, %v1273
        %v1288 = vadd.f32 %v1245, %v1269
        %v1289 = vadd.f32 %v1246, %v1273
        %v1290 = vadd.f32 %v1247, %v1269
        %v1291 = vadd.f32 %v1248, %v1273
        %v1292 = vadd.f32 %v1249, %v1269
        %v1293 = vadd.f32 %v1250, %v1273
        %v1294 = vadd.f32 %v1251, %v1269
        %v1295 = vadd.f32 %v1252, %v1273
        %v1296 = vadd.f32 %v1253, %v1269
        %v1297 = vadd.f32 %v1254, %v1273
        %v1298 = vadd.f32 %v1255, %v1269
        %v1299 = vadd.f32 %v1256, %v1273
        %v1300 = vadd.f32 %v1257, %v1269
        %v1301 = vadd.f32 %v1258, %v1273
        %v1302 = vadd.f32 %v1259, %v1269
        %v1303 = vadd.f32 %v1260, %v1273
        %v1304 = vadd.f32 %v1261, %v1269
        %v1305 = vadd.f32 %v1262, %v1273
        %v1306 = vadd.f32 %v1263, %v1269
        %v1307 = vadd.f32 %v1264, %v1273
        %v1308 = vmax.f32 %v1276, 0.0
        %v1309 = vmax.f32 %v1277, 0.0
        %v1310 = vmax.f32 %v1278, 0.0
        %v1311 = vmax.f32 %v1279, 0.0
        %v1312 = vmax.f32 %v1280, 0.0
        %v1313 = vmax.f32 %v1281, 0.0
        %v1314 = vmax.f32 %v1282, 0.0
        %v1315 = vmax.f32 %v1283, 0.0
        %v1316 = vmax.f32 %v1284, 0.0
        %v1317 = vmax.f32 %v1285, 0.0
        %v1318 = vmax.f32 %v1286, 0.0
        %v1319 = vmax.f32 %v1287, 0.0
        %v1320 = vmax.f32 %v1288, 0.0
        %v1321 = vmax.f32 %v1289, 0.0
        %v1322 = vmax.f32 %v1290, 0.0
        %v1323 = vmax.f32 %v1291, 0.0
        %v1324 = vmax.f32 %v1292, 0.0
        %v1325 = vmax.f32 %v1293, 0.0
        %v1326 = vmax.f32 %v1294, 0.0
        %v1327 = vmax.f32 %v1295, 0.0
        %v1328 = vmax.f32 %v1296, 0.0
        %v1329 = vmax.f32 %v1297, 0.0
        %v1330 = vmax.f32 %v1298, 0.0
        %v1331 = vmax.f32 %v1299, 0.0
        %v1332 = vmax.f32 %v1300, 0.0
        %v1333 = vmax.f32 %v1301, 0.0
        %v1334 = vmax.f32 %v1302, 0.0
        %v1335 = vmax.f32 %v1303, 0.0
        %v1336 = vmax.f32 %v1304, 0.0
        %v1337 = vmax.f32 %v1305, 0.0
        %v1338 = vmax.f32 %v1306, 0.0
        %v1339 = vmax.f32 %v1307, 0.0
        %v1340 = vpack.c.bf16 %v1310, %v1308
        %v1341 = vpack.c.bf16 %v1311, %v1309
        %v1342 = vpack.c.bf16 %v1314, %v1312
        %v1343 = vpack.c.bf16 %v1315, %v1313
        %v1344 = vpack.c.bf16 %v1318, %v1316
        %v1345 = vpack.c.bf16 %v1319, %v1317
        %v1346 = vpack.c.bf16 %v1322, %v1320
        %v1347 = vpack.c.bf16 %v1323, %v1321
        %v1348 = vpack.c.bf16 %v1326, %v1324
        %v1349 = vpack.c.bf16 %v1327, %v1325
        %v1350 = vpack.c.bf16 %v1330, %v1328
        %v1351 = vpack.c.bf16 %v1331, %v1329
        %v1352 = vpack.c.bf16 %v1334, %v1332
        %v1353 = vpack.c.bf16 %v1335, %v1333
        %v1354 = vpack.c.bf16 %v1338, %v1336
        %v1355 = vpack.c.bf16 %v1339, %v1337
        %v1356 = vld [vmem:[#allocation7] sm:$0xf]
        %v1357 = vld [vmem:[#allocation7 + $0x4] sm:$0xf]
        %v1358 = vld [vmem:[#allocation7 + $0x8] sm:$0xf]
        %v1359 = vld [vmem:[#allocation7 + $0xc] sm:$0xf]
        %v1360 = vld [vmem:[#allocation7 + $0x10] sm:$0xf]
        %v1361 = vld [vmem:[#allocation7 + $0x14] sm:$0xf]
        %v1362 = vld [vmem:[#allocation7 + $0x18] sm:$0xf]
        %v1363 = vld [vmem:[#allocation7 + $0x1c] sm:$0xf]
        %v1364 = vld [vmem:[#allocation7 + $0x20] sm:$0xf]
        %v1365 = vld [vmem:[#allocation7 + $0x24] sm:$0xf]
        %v1366 = vld [vmem:[#allocation7 + $0x28] sm:$0xf]
        %v1367 = vld [vmem:[#allocation7 + $0x2c] sm:$0xf]
        %v1368 = vld [vmem:[#allocation7 + $0x30] sm:$0xf]
        %v1369 = vld [vmem:[#allocation7 + $0x34] sm:$0xf]
        %v1370 = vld [vmem:[#allocation7 + $0x38] sm:$0xf]
        %v1371 = vld [vmem:[#allocation7 + $0x3c] sm:$0xf]
        %v1372 = vld [vmem:[#allocation7 + $0x40] sm:$0xf]
        %v1373 = vld [vmem:[#allocation7 + $0x44] sm:$0xf]
        %v1374 = vld [vmem:[#allocation7 + $0x48] sm:$0xf]
        %v1375 = vld [vmem:[#allocation7 + $0x4c] sm:$0xf]
        %v1376 = vld [vmem:[#allocation7 + $0x50] sm:$0xf]
        %v1377 = vld [vmem:[#allocation7 + $0x54] sm:$0xf]
        %v1378 = vld [vmem:[#allocation7 + $0x58] sm:$0xf]
        %v1379 = vld [vmem:[#allocation7 + $0x5c] sm:$0xf]
        %v1380 = vld [vmem:[#allocation7 + $0x60] sm:$0xf]
        %v1381 = vld [vmem:[#allocation7 + $0x64] sm:$0xf]
        %v1382 = vld [vmem:[#allocation7 + $0x68] sm:$0xf]
        %v1383 = vld [vmem:[#allocation7 + $0x6c] sm:$0xf]
        %v1384 = vld [vmem:[#allocation7 + $0x70] sm:$0xf]
        %v1385 = vld [vmem:[#allocation7 + $0x74] sm:$0xf]
        %v1386 = vld [vmem:[#allocation7 + $0x78] sm:$0xf]
        %v1387 = vld [vmem:[#allocation7 + $0x7c] sm:$0xf]
        %v1389 = vlaneseq
        %v1390 = vshrl.u32 %v1389, 7
        %v1391 = vsub.s32 0, %v1390
        %v1392 = vrot.slane %v396, %v1391
        %v1426 = vunpack.c.l.b16 %v1356
        %v1427 = vunpack.c.l.b16 %v1357
        %v1428 = vunpack.c.l.b16 %v1358
        %v1429 = vunpack.c.l.b16 %v1359
        %v1430 = vunpack.c.l.b16 %v1360
        %v1431 = vunpack.c.l.b16 %v1361
        %v1432 = vunpack.c.l.b16 %v1362
        %v1433 = vunpack.c.l.b16 %v1363
        %v1434 = vunpack.c.l.b16 %v1364
        %v1435 = vunpack.c.l.b16 %v1365
        %v1436 = vunpack.c.l.b16 %v1366
        %v1437 = vunpack.c.l.b16 %v1367
        %v1438 = vunpack.c.l.b16 %v1368
        %v1439 = vunpack.c.l.b16 %v1369
        %v1440 = vunpack.c.l.b16 %v1370
        %v1441 = vunpack.c.l.b16 %v1371
        %v1442 = vunpack.c.l.b16 %v1372
        %v1443 = vunpack.c.l.b16 %v1373
        %v1444 = vunpack.c.l.b16 %v1374
        %v1445 = vunpack.c.l.b16 %v1375
        %v1446 = vunpack.c.l.b16 %v1376
        %v1447 = vunpack.c.l.b16 %v1377
        %v1448 = vunpack.c.l.b16 %v1378
        %v1449 = vunpack.c.l.b16 %v1379
        %v1450 = vunpack.c.l.b16 %v1380
        %v1451 = vunpack.c.l.b16 %v1381
        %v1452 = vunpack.c.l.b16 %v1382
        %v1453 = vunpack.c.l.b16 %v1383
        %v1454 = vunpack.c.l.b16 %v1384
        %v1455 = vunpack.c.l.b16 %v1385
        %v1456 = vunpack.c.l.b16 %v1386
        %v1457 = vunpack.c.l.b16 %v1387
        %v1458 = vpack.c.b16 %v1427, %v1426
        %v1459 = vpack.c.b16 %v1429, %v1428
        %v1460 = vpack.c.b16 %v1431, %v1430
        %v1461 = vpack.c.b16 %v1433, %v1432
        %v1462 = vpack.c.b16 %v1435, %v1434
        %v1463 = vpack.c.b16 %v1437, %v1436
        %v1464 = vpack.c.b16 %v1439, %v1438
        %v1465 = vpack.c.b16 %v1441, %v1440
        %v1466 = vpack.c.b16 %v1443, %v1442
        %v1467 = vpack.c.b16 %v1445, %v1444
        %v1468 = vpack.c.b16 %v1447, %v1446
        %v1469 = vpack.c.b16 %v1449, %v1448
        %v1470 = vpack.c.b16 %v1451, %v1450
        %v1471 = vpack.c.b16 %v1453, %v1452
        %v1472 = vpack.c.b16 %v1455, %v1454
        %v1473 = vpack.c.b16 %v1457, %v1456
        %1490 = vmatprep.subr.bf16.mxu0 0
        %1491 = vmatpush1.bf16.msra.mxu0 %v1458
        %1492 = vmatprep.subr.bf16.mxu0 0
        %1493 = vmatpush1.bf16.msra.mxu0 %v1459
        %1494 = vmatprep.subr.bf16.mxu0 0
        %1495 = vmatpush1.bf16.msra.mxu0 %v1460
        %1496 = vmatprep.subr.bf16.mxu0 0
        %1497 = vmatpush1.bf16.msra.mxu0 %v1461
        %1498 = vmatprep.subr.bf16.mxu0 0
        %1499 = vmatpush1.bf16.msra.mxu0 %v1462
        %1500 = vmatprep.subr.bf16.mxu0 0
        %1501 = vmatpush1.bf16.msra.mxu0 %v1463
        %1502 = vmatprep.subr.bf16.mxu0 0
        %1503 = vmatpush1.bf16.msra.mxu0 %v1464
        %1504 = vmatprep.subr.bf16.mxu0 0
        %1505 = vmatpush1.bf16.msra.mxu0 %v1465
        %1506 = vmatprep.subr.bf16.mxu0 0
        %1507 = vmatpush1.bf16.msra.mxu0 %v1466
        %1508 = vmatprep.subr.bf16.mxu0 0
        %1509 = vmatpush1.bf16.msra.mxu0 %v1467
        %1510 = vmatprep.subr.bf16.mxu0 0
        %1511 = vmatpush1.bf16.msra.mxu0 %v1468
        %1512 = vmatprep.subr.bf16.mxu0 0
        %1513 = vmatpush1.bf16.msra.mxu0 %v1469
        %1514 = vmatprep.subr.bf16.mxu0 0
        %1515 = vmatpush1.bf16.msra.mxu0 %v1470
        %1516 = vmatprep.subr.bf16.mxu0 0
        %1517 = vmatpush1.bf16.msra.mxu0 %v1471
        %1518 = vmatprep.subr.bf16.mxu0 0
        %1519 = vmatpush1.bf16.msra.mxu0 %v1472
        %1520 = vmatprep.subr.bf16.mxu0 0
        %1521 = vmatpush1.bf16.msra.mxu0 %v1473
        %1522 = vmatprep.mubr.bf16.mxu0 %v1341
        %1523 = vmatmul.mubr.bf16.gmra.mrb[0].mxu0 %v1340
        %v1524 = vpop.f32.mrb[0].mxu0
        %v1525 = vadd.f32 %v1392, %v1524
        %v1526 = vpop.f32.mrb[0].mxu0
        %v1527 = vpop.f32.mrb[0].mxu0
        %v1528 = vadd.f32 %v1392, %v1527
        %v1529 = vpop.f32.mrb[0].mxu0
        %1530 = vmatprep.mubr.bf16.mxu0 %v1343
        %1531 = vmatmul.mubr.bf16.gmra.mrb[0].mxu0 %v1342
        %v1532 = vpop.f32.mrb[0].mxu0
        %v1533 = vadd.f32 %v1392, %v1532
        %v1534 = vpop.f32.mrb[0].mxu0
        %v1535 = vpop.f32.mrb[0].mxu0
        %v1536 = vadd.f32 %v1392, %v1535
        %v1537 = vpop.f32.mrb[0].mxu0
        %1538 = vmatprep.mubr.bf16.mxu0 %v1345
        %1539 = vmatmul.mubr.bf16.gmra.mrb[0].mxu0 %v1344
        %v1540 = vpop.f32.mrb[0].mxu0
        %v1541 = vadd.f32 %v1392, %v1540
        %v1542 = vpop.f32.mrb[0].mxu0
        %v1543 = vpop.f32.mrb[0].mxu0
        %v1544 = vadd.f32 %v1392, %v1543
        %v1545 = vpop.f32.mrb[0].mxu0
        %1546 = vmatprep.mubr.bf16.mxu0 %v1347
        %1547 = vmatmul.mubr.bf16.gmra.mrb[0].mxu0 %v1346
        %v1548 = vpop.f32.mrb[0].mxu0
        %v1549 = vadd.f32 %v1392, %v1548
        %v1550 = vpop.f32.mrb[0].mxu0
        %v1551 = vpop.f32.mrb[0].mxu0
        %v1552 = vadd.f32 %v1392, %v1551
        %v1553 = vpop.f32.mrb[0].mxu0
        %1554 = vmatprep.mubr.bf16.mxu0 %v1349
        %1555 = vmatmul.mubr.bf16.gmra.mrb[0].mxu0 %v1348
        %v1556 = vpop.f32.mrb[0].mxu0
        %v1557 = vadd.f32 %v1392, %v1556
        %v1558 = vpop.f32.mrb[0].mxu0
        %v1559 = vpop.f32.mrb[0].mxu0
        %v1560 = vadd.f32 %v1392, %v1559
        %v1561 = vpop.f32.mrb[0].mxu0
        %1562 = vmatprep.mubr.bf16.mxu0 %v1351
        %1563 = vmatmul.mubr.bf16.gmra.mrb[0].mxu0 %v1350
        %v1564 = vpop.f32.mrb[0].mxu0
        %v1565 = vadd.f32 %v1392, %v1564
        %v1566 = vpop.f32.mrb[0].mxu0
        %v1567 = vpop.f32.mrb[0].mxu0
        %v1568 = vadd.f32 %v1392, %v1567
        %v1569 = vpop.f32.mrb[0].mxu0
        %1570 = vmatprep.mubr.bf16.mxu0 %v1353
        %1571 = vmatmul.mubr.bf16.gmra.mrb[0].mxu0 %v1352
        %v1572 = vpop.f32.mrb[0].mxu0
        %v1573 = vadd.f32 %v1392, %v1572
        %v1574 = vpop.f32.mrb[0].mxu0
        %v1575 = vpop.f32.mrb[0].mxu0
        %v1576 = vadd.f32 %v1392, %v1575
        %v1577 = vpop.f32.mrb[0].mxu0
        %1578 = vmatprep.mubr.bf16.mxu0 %v1355
        %1579 = vmatmul.mubr.bf16.gmra.mrb[0].mxu0 %v1354
        %v1580 = vpop.f32.mrb[0].mxu0
        %v1581 = vadd.f32 %v1392, %v1580
        %v1582 = vpop.f32.mrb[0].mxu0
        %v1583 = vpop.f32.mrb[0].mxu0
        %v1584 = vadd.f32 %v1392, %v1583
        %v1585 = vpop.f32.mrb[0].mxu0
        %1586 = vdwg.mxu0
        %v1587 = vmul.f32 %v1525, %v1525
        %v1588 = vmul.f32 %v1528, %v1528
        %v1589 = vmul.f32 %v1533, %v1533
        %v1590 = vmul.f32 %v1536, %v1536
        %v1591 = vmul.f32 %v1541, %v1541
        %v1592 = vmul.f32 %v1544, %v1544
        %v1593 = vmul.f32 %v1549, %v1549
        %v1594 = vmul.f32 %v1552, %v1552
        %v1595 = vmul.f32 %v1557, %v1557
        %v1596 = vmul.f32 %v1560, %v1560
        %v1597 = vmul.f32 %v1565, %v1565
        %v1598 = vmul.f32 %v1568, %v1568
        %v1599 = vmul.f32 %v1573, %v1573
        %v1600 = vmul.f32 %v1576, %v1576
        %v1601 = vmul.f32 %v1581, %v1581
        %v1602 = vmul.f32 %v1584, %v1584
        %1603 = vadd.xlane.f32.xlu0 %v1587
        %v1604 = vpop.xlane.xlu0 %1603
        %1605 = vadd.xlane.f32.xlu0 %v1588
        %v1606 = vpop.xlane.xlu0 %1605
        %1607 = vadd.xlane.f32.xlu0 %v1589
        %v1608 = vpop.xlane.xlu0 %1607
        %1609 = vadd.xlane.f32.xlu0 %v1590
        %v1610 = vpop.xlane.xlu0 %1609
        %1611 = vadd.xlane.f32.xlu0 %v1591
        %v1612 = vpop.xlane.xlu0 %1611
        %1613 = vadd.xlane.f32.xlu0 %v1592
        %v1614 = vpop.xlane.xlu0 %1613
        %1615 = vadd.xlane.f32.xlu0 %v1593
        %v1616 = vpop.xlane.xlu0 %1615
        %1617 = vadd.xlane.f32.xlu0 %v1594
        %v1618 = vpop.xlane.xlu0 %1617
        %1619 = vadd.xlane.f32.xlu0 %v1595
        %v1620 = vpop.xlane.xlu0 %1619
        %1621 = vadd.xlane.f32.xlu0 %v1596
        %v1622 = vpop.xlane.xlu0 %1621
        %1623 = vadd.xlane.f32.xlu0 %v1597
        %v1624 = vpop.xlane.xlu0 %1623
        %1625 = vadd.xlane.f32.xlu0 %v1598
        %v1626 = vpop.xlane.xlu0 %1625
        %1627 = vadd.xlane.f32.xlu0 %v1599
        %v1628 = vpop.xlane.xlu0 %1627
        %1629 = vadd.xlane.f32.xlu0 %v1600
        %v1630 = vpop.xlane.xlu0 %1629
        %1631 = vadd.xlane.f32.xlu0 %v1601
        %v1632 = vpop.xlane.xlu0 %1631
        %1633 = vadd.xlane.f32.xlu0 %v1602
        %v1634 = vpop.xlane.xlu0 %1633
        %v1635 = vrsqrt.pop %v1604
        %v1636 = vrsqrt.pop %v1606
        %v1637 = vrsqrt.pop %v1608
        %v1638 = vrsqrt.pop %v1610
        %v1639 = vrsqrt.pop %v1612
        %v1640 = vrsqrt.pop %v1614
        %v1641 = vrsqrt.pop %v1616
        %v1642 = vrsqrt.pop %v1618
        %v1643 = vrsqrt.pop %v1620
        %v1644 = vrsqrt.pop %v1622
        %v1645 = vrsqrt.pop %v1624
        %v1646 = vrsqrt.pop %v1626
        %v1647 = vrsqrt.pop %v1628
        %v1648 = vrsqrt.pop %v1630
        %v1649 = vrsqrt.pop %v1632
        %v1650 = vrsqrt.pop %v1634
        %v1651 = vmul.f32 %v1525, %v1635
        %v1652 = vmul.f32 %v1528, %v1636
        %v1653 = vmul.f32 %v1533, %v1637
        %v1654 = vmul.f32 %v1536, %v1638
        %v1655 = vmul.f32 %v1541, %v1639
        %v1656 = vmul.f32 %v1544, %v1640
        %v1657 = vmul.f32 %v1549, %v1641
        %v1658 = vmul.f32 %v1552, %v1642
        %v1659 = vmul.f32 %v1557, %v1643
        %v1660 = vmul.f32 %v1560, %v1644
        %v1661 = vmul.f32 %v1565, %v1645
        %v1662 = vmul.f32 %v1568, %v1646
        %v1663 = vmul.f32 %v1573, %v1647
        %v1664 = vmul.f32 %v1576, %v1648
        %v1665 = vmul.f32 %v1581, %v1649
        %v1666 = vmul.f32 %v1584, %v1650
        %v1667 = vpack.c.bf16 %v1652, %v1651
        %v1668 = vpack.c.bf16 %v1654, %v1653
        %v1669 = vpack.c.bf16 %v1656, %v1655
        %v1670 = vpack.c.bf16 %v1658, %v1657
        %v1671 = vpack.c.bf16 %v1660, %v1659
        %v1672 = vpack.c.bf16 %v1662, %v1661
        %v1673 = vpack.c.bf16 %v1664, %v1663
        %v1674 = vpack.c.bf16 %v1666, %v1665
        %v1675 = vld [vmem:[#allocation8] sm:$0xff]
        %v1676 = vld [vmem:[#allocation8 + $0x8] sm:$0xff]
        %v1677 = vld [vmem:[#allocation8 + $0x10] sm:$0xff]
        %v1678 = vld [vmem:[#allocation8 + $0x18] sm:$0xff]
        %v1679 = vld [vmem:[#allocation8 + $0x20] sm:$0xff]
        %v1680 = vld [vmem:[#allocation8 + $0x28] sm:$0xff]
        %v1681 = vld [vmem:[#allocation8 + $0x30] sm:$0xff]
        %v1682 = vld [vmem:[#allocation8 + $0x38] sm:$0xff]
        %v1683 = vld [vmem:[#allocation8 + $0x40] sm:$0xff]
        %v1684 = vld [vmem:[#allocation8 + $0x48] sm:$0xff]
        %v1685 = vld [vmem:[#allocation8 + $0x50] sm:$0xff]
        %v1686 = vld [vmem:[#allocation8 + $0x58] sm:$0xff]
        %v1687 = vld [vmem:[#allocation8 + $0x60] sm:$0xff]
        %v1688 = vld [vmem:[#allocation8 + $0x68] sm:$0xff]
        %v1689 = vld [vmem:[#allocation8 + $0x70] sm:$0xff]
        %v1690 = vld [vmem:[#allocation8 + $0x78] sm:$0xff]
        %v1692 = vlaneseq
        %v1693 = vshrl.u32 %v1692, 7
        %v1694 = vsub.s32 0, %v1693
        %v1695 = vrot.slane %v397, %v1694
        %v1696 = vlaneseq
        %v1697 = vshrl.u32 %v1696, 7
        %v1698 = vsub.s32 1, %v1697
        %v1699 = vrot.slane %v397, %v1698
        %v1718 = vunpack.c.l.b16 %v1675
        %v1719 = vunpack.c.h.b16 %v1675
        %v1720 = vunpack.c.l.b16 %v1676
        %v1721 = vunpack.c.h.b16 %v1676
        %v1722 = vunpack.c.l.b16 %v1677
        %v1723 = vunpack.c.h.b16 %v1677
        %v1724 = vunpack.c.l.b16 %v1678
        %v1725 = vunpack.c.h.b16 %v1678
        %v1726 = vunpack.c.l.b16 %v1679
        %v1727 = vunpack.c.h.b16 %v1679
        %v1728 = vunpack.c.l.b16 %v1680
        %v1729 = vunpack.c.h.b16 %v1680
        %v1730 = vunpack.c.l.b16 %v1681
        %v1731 = vunpack.c.h.b16 %v1681
        %v1732 = vunpack.c.l.b16 %v1682
        %v1733 = vunpack.c.h.b16 %v1682
        %v1734 = vunpack.c.l.b16 %v1683
        %v1735 = vunpack.c.h.b16 %v1683
        %v1736 = vunpack.c.l.b16 %v1684
        %v1737 = vunpack.c.h.b16 %v1684
        %v1738 = vunpack.c.l.b16 %v1685
        %v1739 = vunpack.c.h.b16 %v1685
        %v1740 = vunpack.c.l.b16 %v1686
        %v1741 = vunpack.c.h.b16 %v1686
        %v1742 = vunpack.c.l.b16 %v1687
        %v1743 = vunpack.c.h.b16 %v1687
        %v1744 = vunpack.c.l.b16 %v1688
        %v1745 = vunpack.c.h.b16 %v1688
        %v1746 = vunpack.c.l.b16 %v1689
        %v1747 = vunpack.c.h.b16 %v1689
        %v1748 = vunpack.c.l.b16 %v1690
        %v1749 = vunpack.c.h.b16 %v1690
        %v1750 = vpack.c.b16 %v1720, %v1718
        %v1751 = vpack.c.b16 %v1721, %v1719
        %v1752 = vpack.c.b16 %v1724, %v1722
        %v1753 = vpack.c.b16 %v1725, %v1723
        %v1754 = vpack.c.b16 %v1728, %v1726
        %v1755 = vpack.c.b16 %v1729, %v1727
        %v1756 = vpack.c.b16 %v1732, %v1730
        %v1757 = vpack.c.b16 %v1733, %v1731
        %v1758 = vpack.c.b16 %v1736, %v1734
        %v1759 = vpack.c.b16 %v1737, %v1735
        %v1760 = vpack.c.b16 %v1740, %v1738
        %v1761 = vpack.c.b16 %v1741, %v1739
        %v1762 = vpack.c.b16 %v1744, %v1742
        %v1763 = vpack.c.b16 %v1745, %v1743
        %v1764 = vpack.c.b16 %v1748, %v1746
        %v1765 = vpack.c.b16 %v1749, %v1747
        %1782 = vmatprep.subr.bf16.mxu0 %v1751
        %1783 = vmatpush1.bf16.msra.mxu0 %v1750
        %1784 = vmatprep.subr.bf16.mxu0 %v1753
        %1785 = vmatpush1.bf16.msra.mxu0 %v1752
        %1786 = vmatprep.subr.bf16.mxu0 %v1755
        %1787 = vmatpush1.bf16.msra.mxu0 %v1754
        %1788 = vmatprep.subr.bf16.mxu0 %v1757
        %1789 = vmatpush1.bf16.msra.mxu0 %v1756
        %1790 = vmatprep.subr.bf16.mxu0 %v1759
        %1791 = vmatpush1.bf16.msra.mxu0 %v1758
        %1792 = vmatprep.subr.bf16.mxu0 %v1761
        %1793 = vmatpush1.bf16.msra.mxu0 %v1760
        %1794 = vmatprep.subr.bf16.mxu0 %v1763
        %1795 = vmatpush1.bf16.msra.mxu0 %v1762
        %1796 = vmatprep.subr.bf16.mxu0 %v1765
        %1797 = vmatpush1.bf16.msra.mxu0 %v1764
        %1798 = vmatprep.subr.bf16.mxu0 0
        %1799 = vmatpush1.bf16.msra.mxu0 0
        %1800 = vmatprep.subr.bf16.mxu0 0
        %1801 = vmatpush1.bf16.msra.mxu0 0
        %1802 = vmatprep.subr.bf16.mxu0 0
        %1803 = vmatpush1.bf16.msra.mxu0 0
        %1804 = vmatprep.subr.bf16.mxu0 0
        %1805 = vmatpush1.bf16.msra.mxu0 0
        %1806 = vmatprep.subr.bf16.mxu0 0
        %1807 = vmatpush1.bf16.msra.mxu0 0
        %1808 = vmatprep.subr.bf16.mxu0 0
        %1809 = vmatpush1.bf16.msra.mxu0 0
        %1810 = vmatprep.subr.bf16.mxu0 0
        %1811 = vmatpush1.bf16.msra.mxu0 0
        %1812 = vmatprep.subr.bf16.mxu0 0
        %1813 = vmatpush1.bf16.msra.mxu0 0
        %1814 = vmatprep.mubr.bf16.mxu0 0
        %1815 = vmatmul.mubr.bf16.gmra.mrb[0].mxu0 %v1667
        %v1816 = vpop.f32.mrb[0].mxu0
        %v1817 = vadd.f32 %v1695, %v1816
        %v1818 = vpop.f32.mrb[0].mxu0
        %v1819 = vadd.f32 %v1699, %v1818
        %v1820 = vpop.f32.mrb[0].mxu0
        %v1821 = vadd.f32 %v1695, %v1820
        %v1822 = vpop.f32.mrb[0].mxu0
        %v1823 = vadd.f32 %v1699, %v1822
        %1824 = vmatprep.mubr.bf16.mxu0 0
        %1825 = vmatmul.mubr.bf16.gmra.mrb[0].mxu0 %v1668
        %v1826 = vpop.f32.mrb[0].mxu0
        %v1827 = vadd.f32 %v1695, %v1826
        %v1828 = vpop.f32.mrb[0].mxu0
        %v1829 = vadd.f32 %v1699, %v1828
        %v1830 = vpop.f32.mrb[0].mxu0
        %v1831 = vadd.f32 %v1695, %v1830
        %v1832 = vpop.f32.mrb[0].mxu0
        %v1833 = vadd.f32 %v1699, %v1832
        %1834 = vmatprep.mubr.bf16.mxu0 0
        %1835 = vmatmul.mubr.bf16.gmra.mrb[0].mxu0 %v1669
        %v1836 = vpop.f32.mrb[0].mxu0
        %v1837 = vadd.f32 %v1695, %v1836
        %v1838 = vpop.f32.mrb[0].mxu0
        %v1839 = vadd.f32 %v1699, %v1838
        %v1840 = vpop.f32.mrb[0].mxu0
        %v1841 = vadd.f32 %v1695, %v1840
        %v1842 = vpop.f32.mrb[0].mxu0
        %v1843 = vadd.f32 %v1699, %v1842
        %1844 = vmatprep.mubr.bf16.mxu0 0
        %1845 = vmatmul.mubr.bf16.gmra.mrb[0].mxu0 %v1670
        %v1846 = vpop.f32.mrb[0].mxu0
        %v1847 = vadd.f32 %v1695, %v1846
        %v1848 = vpop.f32.mrb[0].mxu0
        %v1849 = vadd.f32 %v1699, %v1848
        %v1850 = vpop.f32.mrb[0].mxu0
        %v1851 = vadd.f32 %v1695, %v1850
        %v1852 = vpop.f32.mrb[0].mxu0
        %v1853 = vadd.f32 %v1699, %v1852
        %1854 = vmatprep.mubr.bf16.mxu0 0
        %1855 = vmatmul.mubr.bf16.gmra.mrb[0].mxu0 %v1671
        %v1856 = vpop.f32.mrb[0].mxu0
        %v1857 = vadd.f32 %v1695, %v1856
        %v1858 = vpop.f32.mrb[0].mxu0
        %v1859 = vadd.f32 %v1699, %v1858
        %v1860 = vpop.f32.mrb[0].mxu0
        %v1861 = vadd.f32 %v1695, %v1860
        %v1862 = vpop.f32.mrb[0].mxu0
        %v1863 = vadd.f32 %v1699, %v1862
        %1864 = vmatprep.mubr.bf16.mxu0 0
        %1865 = vmatmul.mubr.bf16.gmra.mrb[0].mxu0 %v1672
        %v1866 = vpop.f32.mrb[0].mxu0
        %v1867 = vadd.f32 %v1695, %v1866
        %v1868 = vpop.f32.mrb[0].mxu0
        %v1869 = vadd.f32 %v1699, %v1868
        %v1870 = vpop.f32.mrb[0].mxu0
        %v1871 = vadd.f32 %v1695, %v1870
        %v1872 = vpop.f32.mrb[0].mxu0
        %v1873 = vadd.f32 %v1699, %v1872
        %1874 = vmatprep.mubr.bf16.mxu0 0
        %1875 = vmatmul.mubr.bf16.gmra.mrb[0].mxu0 %v1673
        %v1876 = vpop.f32.mrb[0].mxu0
        %v1877 = vadd.f32 %v1695, %v1876
        %v1878 = vpop.f32.mrb[0].mxu0
        %v1879 = vadd.f32 %v1699, %v1878
        %v1880 = vpop.f32.mrb[0].mxu0
        %v1881 = vadd.f32 %v1695, %v1880
        %v1882 = vpop.f32.mrb[0].mxu0
        %v1883 = vadd.f32 %v1699, %v1882
        %1884 = vmatprep.mubr.bf16.mxu0 0
        %1885 = vmatmul.mubr.bf16.gmra.mrb[0].mxu0 %v1674
        %v1886 = vpop.f32.mrb[0].mxu0
        %v1887 = vadd.f32 %v1695, %v1886
        %v1888 = vpop.f32.mrb[0].mxu0
        %v1889 = vadd.f32 %v1699, %v1888
        %v1890 = vpop.f32.mrb[0].mxu0
        %v1891 = vadd.f32 %v1695, %v1890
        %v1892 = vpop.f32.mrb[0].mxu0
        %v1893 = vadd.f32 %v1699, %v1892
        %1894 = vdwg.mxu0
        %v1895 = vmax.f32 %v1817, 0.0
        %v1896 = vmax.f32 %v1819, 0.0
        %v1897 = vmax.f32 %v1821, 0.0
        %v1898 = vmax.f32 %v1823, 0.0
        %v1899 = vmax.f32 %v1827, 0.0
        %v1900 = vmax.f32 %v1829, 0.0
        %v1901 = vmax.f32 %v1831, 0.0
        %v1902 = vmax.f32 %v1833, 0.0
        %v1903 = vmax.f32 %v1837, 0.0
        %v1904 = vmax.f32 %v1839, 0.0
        %v1905 = vmax.f32 %v1841, 0.0
        %v1906 = vmax.f32 %v1843, 0.0
        %v1907 = vmax.f32 %v1847, 0.0
        %v1908 = vmax.f32 %v1849, 0.0
        %v1909 = vmax.f32 %v1851, 0.0
        %v1910 = vmax.f32 %v1853, 0.0
        %v1911 = vmax.f32 %v1857, 0.0
        %v1912 = vmax.f32 %v1859, 0.0
        %v1913 = vmax.f32 %v1861, 0.0
        %v1914 = vmax.f32 %v1863, 0.0
        %v1915 = vmax.f32 %v1867, 0.0
        %v1916 = vmax.f32 %v1869, 0.0
        %v1917 = vmax.f32 %v1871, 0.0
        %v1918 = vmax.f32 %v1873, 0.0
        %v1919 = vmax.f32 %v1877, 0.0
        %v1920 = vmax.f32 %v1879, 0.0
        %v1921 = vmax.f32 %v1881, 0.0
        %v1922 = vmax.f32 %v1883, 0.0
        %v1923 = vmax.f32 %v1887, 0.0
        %v1924 = vmax.f32 %v1889, 0.0
        %v1925 = vmax.f32 %v1891, 0.0
        %v1926 = vmax.f32 %v1893, 0.0
        %v1927 = vpack.c.bf16 %v1897, %v1895
        %v1928 = vpack.c.bf16 %v1898, %v1896
        %v1929 = vpack.c.bf16 %v1901, %v1899
        %v1930 = vpack.c.bf16 %v1902, %v1900
        %v1931 = vpack.c.bf16 %v1905, %v1903
        %v1932 = vpack.c.bf16 %v1906, %v1904
        %v1933 = vpack.c.bf16 %v1909, %v1907
        %v1934 = vpack.c.bf16 %v1910, %v1908
        %v1935 = vpack.c.bf16 %v1913, %v1911
        %v1936 = vpack.c.bf16 %v1914, %v1912
        %v1937 = vpack.c.bf16 %v1917, %v1915
        %v1938 = vpack.c.bf16 %v1918, %v1916
        %v1939 = vpack.c.bf16 %v1921, %v1919
        %v1940 = vpack.c.bf16 %v1922, %v1920
        %v1941 = vpack.c.bf16 %v1925, %v1923
        %v1942 = vpack.c.bf16 %v1926, %v1924
        %v1943 = vld [vmem:[#allocation10] sm:$0xff]
        %v1944 = vld [vmem:[#allocation10 + $0x8] sm:$0xff]
        %v1945 = vld [vmem:[#allocation10 + $0x10] sm:$0xff]
        %v1946 = vld [vmem:[#allocation10 + $0x18] sm:$0xff]
        %v1947 = vld [vmem:[#allocation10 + $0x20] sm:$0xff]
        %v1948 = vld [vmem:[#allocation10 + $0x28] sm:$0xff]
        %v1949 = vld [vmem:[#allocation10 + $0x30] sm:$0xff]
        %v1950 = vld [vmem:[#allocation10 + $0x38] sm:$0xff]
        %v1951 = vld [vmem:[#allocation10 + $0x40] sm:$0xff]
        %v1952 = vld [vmem:[#allocation10 + $0x48] sm:$0xff]
        %v1953 = vld [vmem:[#allocation10 + $0x50] sm:$0xff]
        %v1954 = vld [vmem:[#allocation10 + $0x58] sm:$0xff]
        %v1955 = vld [vmem:[#allocation10 + $0x60] sm:$0xff]
        %v1956 = vld [vmem:[#allocation10 + $0x68] sm:$0xff]
        %v1957 = vld [vmem:[#allocation10 + $0x70] sm:$0xff]
        %v1958 = vld [vmem:[#allocation10 + $0x78] sm:$0xff]
        %v1959 = vld [vmem:[#allocation10 + $0x80] sm:$0xff]
        %v1960 = vld [vmem:[#allocation10 + $0x88] sm:$0xff]
        %v1961 = vld [vmem:[#allocation10 + $0x90] sm:$0xff]
        %v1962 = vld [vmem:[#allocation10 + $0x98] sm:$0xff]
        %v1963 = vld [vmem:[#allocation10 + $0xa0] sm:$0xff]
        %v1964 = vld [vmem:[#allocation10 + $0xa8] sm:$0xff]
        %v1965 = vld [vmem:[#allocation10 + $0xb0] sm:$0xff]
        %v1966 = vld [vmem:[#allocation10 + $0xb8] sm:$0xff]
        %v1967 = vld [vmem:[#allocation10 + $0xc0] sm:$0xff]
        %v1968 = vld [vmem:[#allocation10 + $0xc8] sm:$0xff]
        %v1969 = vld [vmem:[#allocation10 + $0xd0] sm:$0xff]
        %v1970 = vld [vmem:[#allocation10 + $0xd8] sm:$0xff]
        %v1971 = vld [vmem:[#allocation10 + $0xe0] sm:$0xff]
        %v1972 = vld [vmem:[#allocation10 + $0xe8] sm:$0xff]
        %v1973 = vld [vmem:[#allocation10 + $0xf0] sm:$0xff]
        %v1974 = vld [vmem:[#allocation10 + $0xf8] sm:$0xff]
        %v1975 = vld [vmem:[#allocation10 + $0x100] sm:$0xff]
        %v1976 = vld [vmem:[#allocation10 + $0x108] sm:$0xff]
        %v1977 = vld [vmem:[#allocation10 + $0x110] sm:$0xff]
        %v1978 = vld [vmem:[#allocation10 + $0x118] sm:$0xff]
        %v1979 = vld [vmem:[#allocation10 + $0x120] sm:$0xff]
        %v1980 = vld [vmem:[#allocation10 + $0x128] sm:$0xff]
        %v1981 = vld [vmem:[#allocation10 + $0x130] sm:$0xff]
        %v1982 = vld [vmem:[#allocation10 + $0x138] sm:$0xff]
        %v1983 = vld [vmem:[#allocation10 + $0x140] sm:$0xff]
        %v1984 = vld [vmem:[#allocation10 + $0x148] sm:$0xff]
        %v1985 = vld [vmem:[#allocation10 + $0x150] sm:$0xff]
        %v1986 = vld [vmem:[#allocation10 + $0x158] sm:$0xff]
        %v1987 = vld [vmem:[#allocation10 + $0x160] sm:$0xff]
        %v1988 = vld [vmem:[#allocation10 + $0x168] sm:$0xff]
        %v1989 = vld [vmem:[#allocation10 + $0x170] sm:$0xff]
        %v1990 = vld [vmem:[#allocation10 + $0x178] sm:$0xff]
        %v1991 = vld [vmem:[#allocation10 + $0x180] sm:$0xff]
        %v1992 = vld [vmem:[#allocation10 + $0x188] sm:$0xff]
        %v1993 = vld [vmem:[#allocation10 + $0x190] sm:$0xff]
        %v1994 = vld [vmem:[#allocation10 + $0x198] sm:$0xff]
        %v1995 = vld [vmem:[#allocation10 + $0x1a0] sm:$0xff]
        %v1996 = vld [vmem:[#allocation10 + $0x1a8] sm:$0xff]
        %v1997 = vld [vmem:[#allocation10 + $0x1b0] sm:$0xff]
        %v1998 = vld [vmem:[#allocation10 + $0x1b8] sm:$0xff]
        %v1999 = vld [vmem:[#allocation10 + $0x1c0] sm:$0xff]
        %v2000 = vld [vmem:[#allocation10 + $0x1c8] sm:$0xff]
        %v2001 = vld [vmem:[#allocation10 + $0x1d0] sm:$0xff]
        %v2002 = vld [vmem:[#allocation10 + $0x1d8] sm:$0xff]
        %v2003 = vld [vmem:[#allocation10 + $0x1e0] sm:$0xff]
        %v2004 = vld [vmem:[#allocation10 + $0x1e8] sm:$0xff]
        %v2005 = vld [vmem:[#allocation10 + $0x1f0] sm:$0xff]
        %v2006 = vld [vmem:[#allocation10 + $0x1f8] sm:$0xff]
        %v2008 = vlaneseq
        %v2009 = vshrl.u32 %v2008, 7
        %v2010 = vsub.s32 0, %v2009
        %v2011 = vrot.slane %v398, %v2010
        %v2012 = vlaneseq
        %v2013 = vshrl.u32 %v2012, 7
        %v2014 = vsub.s32 1, %v2013
        %v2015 = vrot.slane %v398, %v2014
        %v2016 = vlaneseq
        %v2017 = vshrl.u32 %v2016, 7
        %v2018 = vsub.s32 2, %v2017
        %v2019 = vrot.slane %v398, %v2018
        %v2020 = vlaneseq
        %v2021 = vshrl.u32 %v2020, 7
        %v2022 = vsub.s32 3, %v2021
        %v2023 = vrot.slane %v398, %v2022
        %v2092 = vunpack.c.l.b16 %v1943
        %v2093 = vunpack.c.h.b16 %v1943
        %v2094 = vunpack.c.l.b16 %v1944
        %v2095 = vunpack.c.h.b16 %v1944
        %v2096 = vunpack.c.l.b16 %v1945
        %v2097 = vunpack.c.h.b16 %v1945
        %v2098 = vunpack.c.l.b16 %v1946
        %v2099 = vunpack.c.h.b16 %v1946
        %v2100 = vunpack.c.l.b16 %v1947
        %v2101 = vunpack.c.h.b16 %v1947
        %v2102 = vunpack.c.l.b16 %v1948
        %v2103 = vunpack.c.h.b16 %v1948
        %v2104 = vunpack.c.l.b16 %v1949
        %v2105 = vunpack.c.h.b16 %v1949
        %v2106 = vunpack.c.l.b16 %v1950
        %v2107 = vunpack.c.h.b16 %v1950
        %v2108 = vunpack.c.l.b16 %v1951
        %v2109 = vunpack.c.h.b16 %v1951
        %v2110 = vunpack.c.l.b16 %v1952
        %v2111 = vunpack.c.h.b16 %v1952
        %v2112 = vunpack.c.l.b16 %v1953
        %v2113 = vunpack.c.h.b16 %v1953
        %v2114 = vunpack.c.l.b16 %v1954
        %v2115 = vunpack.c.h.b16 %v1954
        %v2116 = vunpack.c.l.b16 %v1955
        %v2117 = vunpack.c.h.b16 %v1955
        %v2118 = vunpack.c.l.b16 %v1956
        %v2119 = vunpack.c.h.b16 %v1956
        %v2120 = vunpack.c.l.b16 %v1957
        %v2121 = vunpack.c.h.b16 %v1957
        %v2122 = vunpack.c.l.b16 %v1958
        %v2123 = vunpack.c.h.b16 %v1958
        %v2124 = vunpack.c.l.b16 %v1959
        %v2125 = vunpack.c.h.b16 %v1959
        %v2126 = vunpack.c.l.b16 %v1960
        %v2127 = vunpack.c.h.b16 %v1960
        %v2128 = vunpack.c.l.b16 %v1961
        %v2129 = vunpack.c.h.b16 %v1961
        %v2130 = vunpack.c.l.b16 %v1962
        %v2131 = vunpack.c.h.b16 %v1962
        %v2132 = vunpack.c.l.b16 %v1963
        %v2133 = vunpack.c.h.b16 %v1963
        %v2134 = vunpack.c.l.b16 %v1964
        %v2135 = vunpack.c.h.b16 %v1964
        %v2136 = vunpack.c.l.b16 %v1965
        %v2137 = vunpack.c.h.b16 %v1965
        %v2138 = vunpack.c.l.b16 %v1966
        %v2139 = vunpack.c.h.b16 %v1966
        %v2140 = vunpack.c.l.b16 %v1967
        %v2141 = vunpack.c.h.b16 %v1967
        %v2142 = vunpack.c.l.b16 %v1968
        %v2143 = vunpack.c.h.b16 %v1968
        %v2144 = vunpack.c.l.b16 %v1969
        %v2145 = vunpack.c.h.b16 %v1969
        %v2146 = vunpack.c.l.b16 %v1970
        %v2147 = vunpack.c.h.b16 %v1970
        %v2148 = vunpack.c.l.b16 %v1971
        %v2149 = vunpack.c.h.b16 %v1971
        %v2150 = vunpack.c.l.b16 %v1972
        %v2151 = vunpack.c.h.b16 %v1972
        %v2152 = vunpack.c.l.b16 %v1973
        %v2153 = vunpack.c.h.b16 %v1973
        %v2154 = vunpack.c.l.b16 %v1974
        %v2155 = vunpack.c.h.b16 %v1974
        %v2156 = vunpack.c.l.b16 %v1975
        %v2157 = vunpack.c.h.b16 %v1975
        %v2158 = vunpack.c.l.b16 %v1976
        %v2159 = vunpack.c.h.b16 %v1976
        %v2160 = vunpack.c.l.b16 %v1977
        %v2161 = vunpack.c.h.b16 %v1977
        %v2162 = vunpack.c.l.b16 %v1978
        %v2163 = vunpack.c.h.b16 %v1978
        %v2164 = vunpack.c.l.b16 %v1979
        %v2165 = vunpack.c.h.b16 %v1979
        %v2166 = vunpack.c.l.b16 %v1980
        %v2167 = vunpack.c.h.b16 %v1980
        %v2168 = vunpack.c.l.b16 %v1981
        %v2169 = vunpack.c.h.b16 %v1981
        %v2170 = vunpack.c.l.b16 %v1982
        %v2171 = vunpack.c.h.b16 %v1982
        %v2172 = vunpack.c.l.b16 %v1983
        %v2173 = vunpack.c.h.b16 %v1983
        %v2174 = vunpack.c.l.b16 %v1984
        %v2175 = vunpack.c.h.b16 %v1984
        %v2176 = vunpack.c.l.b16 %v1985
        %v2177 = vunpack.c.h.b16 %v1985
        %v2178 = vunpack.c.l.b16 %v1986
        %v2179 = vunpack.c.h.b16 %v1986
        %v2180 = vunpack.c.l.b16 %v1987
        %v2181 = vunpack.c.h.b16 %v1987
        %v2182 = vunpack.c.l.b16 %v1988
        %v2183 = vunpack.c.h.b16 %v1988
        %v2184 = vunpack.c.l.b16 %v1989
        %v2185 = vunpack.c.h.b16 %v1989
        %v2186 = vunpack.c.l.b16 %v1990
        %v2187 = vunpack.c.h.b16 %v1990
        %v2188 = vunpack.c.l.b16 %v1991
        %v2189 = vunpack.c.h.b16 %v1991
        %v2190 = vunpack.c.l.b16 %v1992
        %v2191 = vunpack.c.h.b16 %v1992
        %v2192 = vunpack.c.l.b16 %v1993
        %v2193 = vunpack.c.h.b16 %v1993
        %v2194 = vunpack.c.l.b16 %v1994
        %v2195 = vunpack.c.h.b16 %v1994
        %v2196 = vunpack.c.l.b16 %v1995
        %v2197 = vunpack.c.h.b16 %v1995
        %v2198 = vunpack.c.l.b16 %v1996
        %v2199 = vunpack.c.h.b16 %v1996
        %v2200 = vunpack.c.l.b16 %v1997
        %v2201 = vunpack.c.h.b16 %v1997
        %v2202 = vunpack.c.l.b16 %v1998
        %v2203 = vunpack.c.h.b16 %v1998
        %v2204 = vunpack.c.l.b16 %v1999
        %v2205 = vunpack.c.h.b16 %v1999
        %v2206 = vunpack.c.l.b16 %v2000
        %v2207 = vunpack.c.h.b16 %v2000
        %v2208 = vunpack.c.l.b16 %v2001
        %v2209 = vunpack.c.h.b16 %v2001
        %v2210 = vunpack.c.l.b16 %v2002
        %v2211 = vunpack.c.h.b16 %v2002
        %v2212 = vunpack.c.l.b16 %v2003
        %v2213 = vunpack.c.h.b16 %v2003
        %v2214 = vunpack.c.l.b16 %v2004
        %v2215 = vunpack.c.h.b16 %v2004
        %v2216 = vunpack.c.l.b16 %v2005
        %v2217 = vunpack.c.h.b16 %v2005
        %v2218 = vunpack.c.l.b16 %v2006
        %v2219 = vunpack.c.h.b16 %v2006
        %v2220 = vpack.c.b16 %v2096, %v2092
        %v2221 = vpack.c.b16 %v2097, %v2093
        %v2222 = vpack.c.b16 %v2098, %v2094
        %v2223 = vpack.c.b16 %v2099, %v2095
        %v2224 = vpack.c.b16 %v2104, %v2100
        %v2225 = vpack.c.b16 %v2105, %v2101
        %v2226 = vpack.c.b16 %v2106, %v2102
        %v2227 = vpack.c.b16 %v2107, %v2103
        %v2228 = vpack.c.b16 %v2112, %v2108
        %v2229 = vpack.c.b16 %v2113, %v2109
        %v2230 = vpack.c.b16 %v2114, %v2110
        %v2231 = vpack.c.b16 %v2115, %v2111
        %v2232 = vpack.c.b16 %v2120, %v2116
        %v2233 = vpack.c.b16 %v2121, %v2117
        %v2234 = vpack.c.b16 %v2122, %v2118
        %v2235 = vpack.c.b16 %v2123, %v2119
        %v2236 = vpack.c.b16 %v2128, %v2124
        %v2237 = vpack.c.b16 %v2129, %v2125
        %v2238 = vpack.c.b16 %v2130, %v2126
        %v2239 = vpack.c.b16 %v2131, %v2127
        %v2240 = vpack.c.b16 %v2136, %v2132
        %v2241 = vpack.c.b16 %v2137, %v2133
        %v2242 = vpack.c.b16 %v2138, %v2134
        %v2243 = vpack.c.b16 %v2139, %v2135
        %v2244 = vpack.c.b16 %v2144, %v2140
        %v2245 = vpack.c.b16 %v2145, %v2141
        %v2246 = vpack.c.b16 %v2146, %v2142
        %v2247 = vpack.c.b16 %v2147, %v2143
        %v2248 = vpack.c.b16 %v2152, %v2148
        %v2249 = vpack.c.b16 %v2153, %v2149
        %v2250 = vpack.c.b16 %v2154, %v2150
        %v2251 = vpack.c.b16 %v2155, %v2151
        %v2252 = vpack.c.b16 %v2160, %v2156
        %v2253 = vpack.c.b16 %v2161, %v2157
        %v2254 = vpack.c.b16 %v2162, %v2158
        %v2255 = vpack.c.b16 %v2163, %v2159
        %v2256 = vpack.c.b16 %v2168, %v2164
        %v2257 = vpack.c.b16 %v2169, %v2165
        %v2258 = vpack.c.b16 %v2170, %v2166
        %v2259 = vpack.c.b16 %v2171, %v2167
        %v2260 = vpack.c.b16 %v2176, %v2172
        %v2261 = vpack.c.b16 %v2177, %v2173
        %v2262 = vpack.c.b16 %v2178, %v2174
        %v2263 = vpack.c.b16 %v2179, %v2175
        %v2264 = vpack.c.b16 %v2184, %v2180
        %v2265 = vpack.c.b16 %v2185, %v2181
        %v2266 = vpack.c.b16 %v2186, %v2182
        %v2267 = vpack.c.b16 %v2187, %v2183
        %v2268 = vpack.c.b16 %v2192, %v2188
        %v2269 = vpack.c.b16 %v2193, %v2189
        %v2270 = vpack.c.b16 %v2194, %v2190
        %v2271 = vpack.c.b16 %v2195, %v2191
        %v2272 = vpack.c.b16 %v2200, %v2196
        %v2273 = vpack.c.b16 %v2201, %v2197
        %v2274 = vpack.c.b16 %v2202, %v2198
        %v2275 = vpack.c.b16 %v2203, %v2199
        %v2276 = vpack.c.b16 %v2208, %v2204
        %v2277 = vpack.c.b16 %v2209, %v2205
        %v2278 = vpack.c.b16 %v2210, %v2206
        %v2279 = vpack.c.b16 %v2211, %v2207
        %v2280 = vpack.c.b16 %v2216, %v2212
        %v2281 = vpack.c.b16 %v2217, %v2213
        %v2282 = vpack.c.b16 %v2218, %v2214
        %v2283 = vpack.c.b16 %v2219, %v2215
        %2348 = vmatprep.subr.bf16.mxu0 %v2221
        %2349 = vmatpush1.bf16.msra.mxu0 %v2220
        %2350 = vmatprep.subr.bf16.mxu0 %v2225
        %2351 = vmatpush1.bf16.msra.mxu0 %v2224
        %2352 = vmatprep.subr.bf16.mxu0 %v2229
        %2353 = vmatpush1.bf16.msra.mxu0 %v2228
        %2354 = vmatprep.subr.bf16.mxu0 %v2233
        %2355 = vmatpush1.bf16.msra.mxu0 %v2232
        %2356 = vmatprep.subr.bf16.mxu0 %v2237
        %2357 = vmatpush1.bf16.msra.mxu0 %v2236
        %2358 = vmatprep.subr.bf16.mxu0 %v2241
        %2359 = vmatpush1.bf16.msra.mxu0 %v2240
        %2360 = vmatprep.subr.bf16.mxu0 %v2245
        %2361 = vmatpush1.bf16.msra.mxu0 %v2244
        %2362 = vmatprep.subr.bf16.mxu0 %v2249
        %2363 = vmatpush1.bf16.msra.mxu0 %v2248
        %2364 = vmatprep.subr.bf16.mxu0 %v2253
        %2365 = vmatpush1.bf16.msra.mxu0 %v2252
        %2366 = vmatprep.subr.bf16.mxu0 %v2257
        %2367 = vmatpush1.bf16.msra.mxu0 %v2256
        %2368 = vmatprep.subr.bf16.mxu0 %v2261
        %2369 = vmatpush1.bf16.msra.mxu0 %v2260
        %2370 = vmatprep.subr.bf16.mxu0 %v2265
        %2371 = vmatpush1.bf16.msra.mxu0 %v2264
        %2372 = vmatprep.subr.bf16.mxu0 %v2269
        %2373 = vmatpush1.bf16.msra.mxu0 %v2268
        %2374 = vmatprep.subr.bf16.mxu0 %v2273
        %2375 = vmatpush1.bf16.msra.mxu0 %v2272
        %2376 = vmatprep.subr.bf16.mxu0 %v2277
        %2377 = vmatpush1.bf16.msra.mxu0 %v2276
        %2378 = vmatprep.subr.bf16.mxu0 %v2281
        %2379 = vmatpush1.bf16.msra.mxu0 %v2280
        %2380 = vmatprep.mubr.bf16.mxu0 %v1928
        %2381 = vmatmul.mubr.bf16.gmra.mrb[0].mxu0 %v1927
        %v2382 = vpop.f32.mrb[0].mxu0
        %v2383 = vadd.f32 %v2011, %v2382
        %v2384 = vpop.f32.mrb[0].mxu0
        %v2385 = vadd.f32 %v2015, %v2384
        %v2386 = vpop.f32.mrb[0].mxu0
        %v2387 = vadd.f32 %v2011, %v2386
        %v2388 = vpop.f32.mrb[0].mxu0
        %v2389 = vadd.f32 %v2015, %v2388
        %2390 = vmatprep.mubr.bf16.mxu0 %v1930
        %2391 = vmatmul.mubr.bf16.gmra.mrb[0].mxu0 %v1929
        %v2392 = vpop.f32.mrb[0].mxu0
        %v2393 = vadd.f32 %v2011, %v2392
        %v2394 = vpop.f32.mrb[0].mxu0
        %v2395 = vadd.f32 %v2015, %v2394
        %v2396 = vpop.f32.mrb[0].mxu0
        %v2397 = vadd.f32 %v2011, %v2396
        %v2398 = vpop.f32.mrb[0].mxu0
        %v2399 = vadd.f32 %v2015, %v2398
        %2400 = vmatprep.mubr.bf16.mxu0 %v1932
        %2401 = vmatmul.mubr.bf16.gmra.mrb[0].mxu0 %v1931
        %v2402 = vpop.f32.mrb[0].mxu0
        %v2403 = vadd.f32 %v2011, %v2402
        %v2404 = vpop.f32.mrb[0].mxu0
        %v2405 = vadd.f32 %v2015, %v2404
        %v2406 = vpop.f32.mrb[0].mxu0
        %v2407 = vadd.f32 %v2011, %v2406
        %v2408 = vpop.f32.mrb[0].mxu0
        %v2409 = vadd.f32 %v2015, %v2408
        %2410 = vmatprep.mubr.bf16.mxu0 %v1934
        %2411 = vmatmul.mubr.bf16.gmra.mrb[0].mxu0 %v1933
        %v2412 = vpop.f32.mrb[0].mxu0
        %v2413 = vadd.f32 %v2011, %v2412
        %v2414 = vpop.f32.mrb[0].mxu0
        %v2415 = vadd.f32 %v2015, %v2414
        %v2416 = vpop.f32.mrb[0].mxu0
        %v2417 = vadd.f32 %v2011, %v2416
        %v2418 = vpop.f32.mrb[0].mxu0
        %v2419 = vadd.f32 %v2015, %v2418
        %2420 = vmatprep.mubr.bf16.mxu0 %v1936
        %2421 = vmatmul.mubr.bf16.gmra.mrb[0].mxu0 %v1935
        %v2422 = vpop.f32.mrb[0].mxu0
        %v2423 = vadd.f32 %v2011, %v2422
        %v2424 = vpop.f32.mrb[0].mxu0
        %v2425 = vadd.f32 %v2015, %v2424
        %v2426 = vpop.f32.mrb[0].mxu0
        %v2427 = vadd.f32 %v2011, %v2426
        %v2428 = vpop.f32.mrb[0].mxu0
        %v2429 = vadd.f32 %v2015, %v2428
        %2430 = vmatprep.mubr.bf16.mxu0 %v1938
        %2431 = vmatmul.mubr.bf16.gmra.mrb[0].mxu0 %v1937
        %v2432 = vpop.f32.mrb[0].mxu0
        %v2433 = vadd.f32 %v2011, %v2432
        %v2434 = vpop.f32.mrb[0].mxu0
        %v2435 = vadd.f32 %v2015, %v2434
        %v2436 = vpop.f32.mrb[0].mxu0
        %v2437 = vadd.f32 %v2011, %v2436
        %v2438 = vpop.f32.mrb[0].mxu0
        %v2439 = vadd.f32 %v2015, %v2438
        %2440 = vmatprep.mubr.bf16.mxu0 %v1940
        %2441 = vmatmul.mubr.bf16.gmra.mrb[0].mxu0 %v1939
        %v2442 = vpop.f32.mrb[0].mxu0
        %v2443 = vadd.f32 %v2011, %v2442
        %v2444 = vpop.f32.mrb[0].mxu0
        %v2445 = vadd.f32 %v2015, %v2444
        %v2446 = vpop.f32.mrb[0].mxu0
        %v2447 = vadd.f32 %v2011, %v2446
        %v2448 = vpop.f32.mrb[0].mxu0
        %v2449 = vadd.f32 %v2015, %v2448
        %2450 = vmatprep.mubr.bf16.mxu0 %v1942
        %2451 = vmatmul.mubr.bf16.gmra.mrb[0].mxu0 %v1941
        %v2452 = vpop.f32.mrb[0].mxu0
        %v2453 = vadd.f32 %v2011, %v2452
        %v2454 = vpop.f32.mrb[0].mxu0
        %v2455 = vadd.f32 %v2015, %v2454
        %v2456 = vpop.f32.mrb[0].mxu0
        %v2457 = vadd.f32 %v2011, %v2456
        %v2458 = vpop.f32.mrb[0].mxu0
        %v2459 = vadd.f32 %v2015, %v2458
        %2460 = vdwg.mxu0
        %2461 = vmatprep.subr.bf16.mxu0 %v2223
        %2462 = vmatpush1.bf16.msra.mxu0 %v2222
        %2463 = vmatprep.subr.bf16.mxu0 %v2227
        %2464 = vmatpush1.bf16.msra.mxu0 %v2226
        %2465 = vmatprep.subr.bf16.mxu0 %v2231
        %2466 = vmatpush1.bf16.msra.mxu0 %v2230
        %2467 = vmatprep.subr.bf16.mxu0 %v2235
        %2468 = vmatpush1.bf16.msra.mxu0 %v2234
        %2469 = vmatprep.subr.bf16.mxu0 %v2239
        %2470 = vmatpush1.bf16.msra.mxu0 %v2238
        %2471 = vmatprep.subr.bf16.mxu0 %v2243
        %2472 = vmatpush1.bf16.msra.mxu0 %v2242
        %2473 = vmatprep.subr.bf16.mxu0 %v2247
        %2474 = vmatpush1.bf16.msra.mxu0 %v2246
        %2475 = vmatprep.subr.bf16.mxu0 %v2251
        %2476 = vmatpush1.bf16.msra.mxu0 %v2250
        %2477 = vmatprep.subr.bf16.mxu0 %v2255
        %2478 = vmatpush1.bf16.msra.mxu0 %v2254
        %2479 = vmatprep.subr.bf16.mxu0 %v2259
        %2480 = vmatpush1.bf16.msra.mxu0 %v2258
        %2481 = vmatprep.subr.bf16.mxu0 %v2263
        %2482 = vmatpush1.bf16.msra.mxu0 %v2262
        %2483 = vmatprep.subr.bf16.mxu0 %v2267
        %2484 = vmatpush1.bf16.msra.mxu0 %v2266
        %2485 = vmatprep.subr.bf16.mxu0 %v2271
        %2486 = vmatpush1.bf16.msra.mxu0 %v2270
        %2487 = vmatprep.subr.bf16.mxu0 %v2275
        %2488 = vmatpush1.bf16.msra.mxu0 %v2274
        %2489 = vmatprep.subr.bf16.mxu0 %v2279
        %2490 = vmatpush1.bf16.msra.mxu0 %v2278
        %2491 = vmatprep.subr.bf16.mxu0 %v2283
        %2492 = vmatpush1.bf16.msra.mxu0 %v2282
        %2493 = vmatprep.mubr.bf16.mxu0 %v1928
        %2494 = vmatmul.mubr.bf16.gmra.mrb[0].mxu0 %v1927
        %v2495 = vpop.f32.mrb[0].mxu0
        %v2496 = vadd.f32 %v2019, %v2495
        %v2497 = vpop.f32.mrb[0].mxu0
        %v2498 = vadd.f32 %v2023, %v2497
        %v2499 = vpop.f32.mrb[0].mxu0
        %v2500 = vadd.f32 %v2019, %v2499
        %v2501 = vpop.f32.mrb[0].mxu0
        %v2502 = vadd.f32 %v2023, %v2501
        %2503 = vmatprep.mubr.bf16.mxu0 %v1930
        %2504 = vmatmul.mubr.bf16.gmra.mrb[0].mxu0 %v1929
        %v2505 = vpop.f32.mrb[0].mxu0
        %v2506 = vadd.f32 %v2019, %v2505
        %v2507 = vpop.f32.mrb[0].mxu0
        %v2508 = vadd.f32 %v2023, %v2507
        %v2509 = vpop.f32.mrb[0].mxu0
        %v2510 = vadd.f32 %v2019, %v2509
        %v2511 = vpop.f32.mrb[0].mxu0
        %v2512 = vadd.f32 %v2023, %v2511
        %2513 = vmatprep.mubr.bf16.mxu0 %v1932
        %2514 = vmatmul.mubr.bf16.gmra.mrb[0].mxu0 %v1931
        %v2515 = vpop.f32.mrb[0].mxu0
        %v2516 = vadd.f32 %v2019, %v2515
        %v2517 = vpop.f32.mrb[0].mxu0
        %v2518 = vadd.f32 %v2023, %v2517
        %v2519 = vpop.f32.mrb[0].mxu0
        %v2520 = vadd.f32 %v2019, %v2519
        %v2521 = vpop.f32.mrb[0].mxu0
        %v2522 = vadd.f32 %v2023, %v2521
        %2523 = vmatprep.mubr.bf16.mxu0 %v1934
        %2524 = vmatmul.mubr.bf16.gmra.mrb[0].mxu0 %v1933
        %v2525 = vpop.f32.mrb[0].mxu0
        %v2526 = vadd.f32 %v2019, %v2525
        %v2527 = vpop.f32.mrb[0].mxu0
        %v2528 = vadd.f32 %v2023, %v2527
        %v2529 = vpop.f32.mrb[0].mxu0
        %v2530 = vadd.f32 %v2019, %v2529
        %v2531 = vpop.f32.mrb[0].mxu0
        %v2532 = vadd.f32 %v2023, %v2531
        %2533 = vmatprep.mubr.bf16.mxu0 %v1936
        %2534 = vmatmul.mubr.bf16.gmra.mrb[0].mxu0 %v1935
        %v2535 = vpop.f32.mrb[0].mxu0
        %v2536 = vadd.f32 %v2019, %v2535
        %v2537 = vpop.f32.mrb[0].mxu0
        %v2538 = vadd.f32 %v2023, %v2537
        %v2539 = vpop.f32.mrb[0].mxu0
        %v2540 = vadd.f32 %v2019, %v2539
        %v2541 = vpop.f32.mrb[0].mxu0
        %v2542 = vadd.f32 %v2023, %v2541
        %2543 = vmatprep.mubr.bf16.mxu0 %v1938
        %2544 = vmatmul.mubr.bf16.gmra.mrb[0].mxu0 %v1937
        %v2545 = vpop.f32.mrb[0].mxu0
        %v2546 = vadd.f32 %v2019, %v2545
        %v2547 = vpop.f32.mrb[0].mxu0
        %v2548 = vadd.f32 %v2023, %v2547
        %v2549 = vpop.f32.mrb[0].mxu0
        %v2550 = vadd.f32 %v2019, %v2549
        %v2551 = vpop.f32.mrb[0].mxu0
        %v2552 = vadd.f32 %v2023, %v2551
        %2553 = vmatprep.mubr.bf16.mxu0 %v1940
        %2554 = vmatmul.mubr.bf16.gmra.mrb[0].mxu0 %v1939
        %v2555 = vpop.f32.mrb[0].mxu0
        %v2556 = vadd.f32 %v2019, %v2555
        %v2557 = vpop.f32.mrb[0].mxu0
        %v2558 = vadd.f32 %v2023, %v2557
        %v2559 = vpop.f32.mrb[0].mxu0
        %v2560 = vadd.f32 %v2019, %v2559
        %v2561 = vpop.f32.mrb[0].mxu0
        %v2562 = vadd.f32 %v2023, %v2561
        %2563 = vmatprep.mubr.bf16.mxu0 %v1942
        %2564 = vmatmul.mubr.bf16.gmra.mrb[0].mxu0 %v1941
        %v2565 = vpop.f32.mrb[0].mxu0
        %v2566 = vadd.f32 %v2019, %v2565
        %v2567 = vpop.f32.mrb[0].mxu0
        %v2568 = vadd.f32 %v2023, %v2567
        %v2569 = vpop.f32.mrb[0].mxu0
        %v2570 = vadd.f32 %v2019, %v2569
        %v2571 = vpop.f32.mrb[0].mxu0
        %v2572 = vadd.f32 %v2023, %v2571
        %2573 = vdwg.mxu0
        %v2574 = vmul.f32 %v2383, %v2383
        %v2575 = vmul.f32 %v2385, %v2385
        %v2576 = vmul.f32 %v2496, %v2496
        %v2577 = vmul.f32 %v2498, %v2498
        %v2578 = vmul.f32 %v2387, %v2387
        %v2579 = vmul.f32 %v2389, %v2389
        %v2580 = vmul.f32 %v2500, %v2500
        %v2581 = vmul.f32 %v2502, %v2502
        %v2582 = vmul.f32 %v2393, %v2393
        %v2583 = vmul.f32 %v2395, %v2395
        %v2584 = vmul.f32 %v2506, %v2506
        %v2585 = vmul.f32 %v2508, %v2508
        %v2586 = vmul.f32 %v2397, %v2397
        %v2587 = vmul.f32 %v2399, %v2399
        %v2588 = vmul.f32 %v2510, %v2510
        %v2589 = vmul.f32 %v2512, %v2512
        %v2590 = vmul.f32 %v2403, %v2403
        %v2591 = vmul.f32 %v2405, %v2405
        %v2592 = vmul.f32 %v2516, %v2516
        %v2593 = vmul.f32 %v2518, %v2518
        %v2594 = vmul.f32 %v2407, %v2407
        %v2595 = vmul.f32 %v2409, %v2409
        %v2596 = vmul.f32 %v2520, %v2520
        %v2597 = vmul.f32 %v2522, %v2522
        %v2598 = vmul.f32 %v2413, %v2413
        %v2599 = vmul.f32 %v2415, %v2415
        %v2600 = vmul.f32 %v2526, %v2526
        %v2601 = vmul.f32 %v2528, %v2528
        %v2602 = vmul.f32 %v2417, %v2417
        %v2603 = vmul.f32 %v2419, %v2419
        %v2604 = vmul.f32 %v2530, %v2530
        %v2605 = vmul.f32 %v2532, %v2532
        %v2606 = vmul.f32 %v2423, %v2423
        %v2607 = vmul.f32 %v2425, %v2425
        %v2608 = vmul.f32 %v2536, %v2536
        %v2609 = vmul.f32 %v2538, %v2538
        %v2610 = vmul.f32 %v2427, %v2427
        %v2611 = vmul.f32 %v2429, %v2429
        %v2612 = vmul.f32 %v2540, %v2540
        %v2613 = vmul.f32 %v2542, %v2542
        %v2614 = vmul.f32 %v2433, %v2433
        %v2615 = vmul.f32 %v2435, %v2435
        %v2616 = vmul.f32 %v2546, %v2546
        %v2617 = vmul.f32 %v2548, %v2548
        %v2618 = vmul.f32 %v2437, %v2437
        %v2619 = vmul.f32 %v2439, %v2439
        %v2620 = vmul.f32 %v2550, %v2550
        %v2621 = vmul.f32 %v2552, %v2552
        %v2622 = vmul.f32 %v2443, %v2443
        %v2623 = vmul.f32 %v2445, %v2445
        %v2624 = vmul.f32 %v2556, %v2556
        %v2625 = vmul.f32 %v2558, %v2558
        %v2626 = vmul.f32 %v2447, %v2447
        %v2627 = vmul.f32 %v2449, %v2449
        %v2628 = vmul.f32 %v2560, %v2560
        %v2629 = vmul.f32 %v2562, %v2562
        %v2630 = vmul.f32 %v2453, %v2453
        %v2631 = vmul.f32 %v2455, %v2455
        %v2632 = vmul.f32 %v2566, %v2566
        %v2633 = vmul.f32 %v2568, %v2568
        %v2634 = vmul.f32 %v2457, %v2457
        %v2635 = vmul.f32 %v2459, %v2459
        %v2636 = vmul.f32 %v2570, %v2570
        %v2637 = vmul.f32 %v2572, %v2572
        %v2638 = vadd.f32 %v2574, %v2575
        %v2639 = vadd.f32 %v2638, %v2576
        %v2640 = vadd.f32 %v2639, %v2577
        %2641 = vadd.xlane.f32.xlu0 %v2640
        %v2642 = vpop.xlane.xlu0 %2641
        %v2643 = vadd.f32 %v2578, %v2579
        %v2644 = vadd.f32 %v2643, %v2580
        %v2645 = vadd.f32 %v2644, %v2581
        %2646 = vadd.xlane.f32.xlu0 %v2645
        %v2647 = vpop.xlane.xlu0 %2646
        %v2648 = vadd.f32 %v2582, %v2583
        %v2649 = vadd.f32 %v2648, %v2584
        %v2650 = vadd.f32 %v2649, %v2585
        %2651 = vadd.xlane.f32.xlu0 %v2650
        %v2652 = vpop.xlane.xlu0 %2651
        %v2653 = vadd.f32 %v2586, %v2587
        %v2654 = vadd.f32 %v2653, %v2588
        %v2655 = vadd.f32 %v2654, %v2589
        %2656 = vadd.xlane.f32.xlu0 %v2655
        %v2657 = vpop.xlane.xlu0 %2656
        %v2658 = vadd.f32 %v2590, %v2591
        %v2659 = vadd.f32 %v2658, %v2592
        %v2660 = vadd.f32 %v2659, %v2593
        %2661 = vadd.xlane.f32.xlu0 %v2660
        %v2662 = vpop.xlane.xlu0 %2661
        %v2663 = vadd.f32 %v2594, %v2595
        %v2664 = vadd.f32 %v2663, %v2596
        %v2665 = vadd.f32 %v2664, %v2597
        %2666 = vadd.xlane.f32.xlu0 %v2665
        %v2667 = vpop.xlane.xlu0 %2666
        %v2668 = vadd.f32 %v2598, %v2599
        %v2669 = vadd.f32 %v2668, %v2600
        %v2670 = vadd.f32 %v2669, %v2601
        %2671 = vadd.xlane.f32.xlu0 %v2670
        %v2672 = vpop.xlane.xlu0 %2671
        %v2673 = vadd.f32 %v2602, %v2603
        %v2674 = vadd.f32 %v2673, %v2604
        %v2675 = vadd.f32 %v2674, %v2605
        %2676 = vadd.xlane.f32.xlu0 %v2675
        %v2677 = vpop.xlane.xlu0 %2676
        %v2678 = vadd.f32 %v2606, %v2607
        %v2679 = vadd.f32 %v2678, %v2608
        %v2680 = vadd.f32 %v2679, %v2609
        %2681 = vadd.xlane.f32.xlu0 %v2680
        %v2682 = vpop.xlane.xlu0 %2681
        %v2683 = vadd.f32 %v2610, %v2611
        %v2684 = vadd.f32 %v2683, %v2612
        %v2685 = vadd.f32 %v2684, %v2613
        %2686 = vadd.xlane.f32.xlu0 %v2685
        %v2687 = vpop.xlane.xlu0 %2686
        %v2688 = vadd.f32 %v2614, %v2615
        %v2689 = vadd.f32 %v2688, %v2616
        %v2690 = vadd.f32 %v2689, %v2617
        %2691 = vadd.xlane.f32.xlu0 %v2690
        %v2692 = vpop.xlane.xlu0 %2691
        %v2693 = vadd.f32 %v2618, %v2619
        %v2694 = vadd.f32 %v2693, %v2620
        %v2695 = vadd.f32 %v2694, %v2621
        %2696 = vadd.xlane.f32.xlu0 %v2695
        %v2697 = vpop.xlane.xlu0 %2696
        %v2698 = vadd.f32 %v2622, %v2623
        %v2699 = vadd.f32 %v2698, %v2624
        %v2700 = vadd.f32 %v2699, %v2625
        %2701 = vadd.xlane.f32.xlu0 %v2700
        %v2702 = vpop.xlane.xlu0 %2701
        %v2703 = vadd.f32 %v2626, %v2627
        %v2704 = vadd.f32 %v2703, %v2628
        %v2705 = vadd.f32 %v2704, %v2629
        %2706 = vadd.xlane.f32.xlu0 %v2705
        %v2707 = vpop.xlane.xlu0 %2706
        %v2708 = vadd.f32 %v2630, %v2631
        %v2709 = vadd.f32 %v2708, %v2632
        %v2710 = vadd.f32 %v2709, %v2633
        %2711 = vadd.xlane.f32.xlu0 %v2710
        %v2712 = vpop.xlane.xlu0 %2711
        %v2713 = vadd.f32 %v2634, %v2635
        %v2714 = vadd.f32 %v2713, %v2636
        %v2715 = vadd.f32 %v2714, %v2637
        %2716 = vadd.xlane.f32.xlu0 %v2715
        %v2717 = vpop.xlane.xlu0 %2716
        %v2718 = vrsqrt.pop %v2642
        %v2719 = vrsqrt.pop %v2647
        %v2720 = vrsqrt.pop %v2652
        %v2721 = vrsqrt.pop %v2657
        %v2722 = vrsqrt.pop %v2662
        %v2723 = vrsqrt.pop %v2667
        %v2724 = vrsqrt.pop %v2672
        %v2725 = vrsqrt.pop %v2677
        %v2726 = vrsqrt.pop %v2682
        %v2727 = vrsqrt.pop %v2687
        %v2728 = vrsqrt.pop %v2692
        %v2729 = vrsqrt.pop %v2697
        %v2730 = vrsqrt.pop %v2702
        %v2731 = vrsqrt.pop %v2707
        %v2732 = vrsqrt.pop %v2712
        %v2733 = vrsqrt.pop %v2717
        %v2734 = vmul.f32 %v2383, %v2718
        %v2735 = vmul.f32 %v2385, %v2718
        %v2736 = vmul.f32 %v2496, %v2718
        %v2737 = vmul.f32 %v2498, %v2718
        %v2738 = vmul.f32 %v2387, %v2719
        %v2739 = vmul.f32 %v2389, %v2719
        %v2740 = vmul.f32 %v2500, %v2719
        %v2741 = vmul.f32 %v2502, %v2719
        %v2742 = vmul.f32 %v2393, %v2720
        %v2743 = vmul.f32 %v2395, %v2720
        %v2744 = vmul.f32 %v2506, %v2720
        %v2745 = vmul.f32 %v2508, %v2720
        %v2746 = vmul.f32 %v2397, %v2721
        %v2747 = vmul.f32 %v2399, %v2721
        %v2748 = vmul.f32 %v2510, %v2721
        %v2749 = vmul.f32 %v2512, %v2721
        %v2750 = vmul.f32 %v2403, %v2722
        %v2751 = vmul.f32 %v2405, %v2722
        %v2752 = vmul.f32 %v2516, %v2722
        %v2753 = vmul.f32 %v2518, %v2722
        %v2754 = vmul.f32 %v2407, %v2723
        %v2755 = vmul.f32 %v2409, %v2723
        %v2756 = vmul.f32 %v2520, %v2723
        %v2757 = vmul.f32 %v2522, %v2723
        %v2758 = vmul.f32 %v2413, %v2724
        %v2759 = vmul.f32 %v2415, %v2724
        %v2760 = vmul.f32 %v2526, %v2724
        %v2761 = vmul.f32 %v2528, %v2724
        %v2762 = vmul.f32 %v2417, %v2725
        %v2763 = vmul.f32 %v2419, %v2725
        %v2764 = vmul.f32 %v2530, %v2725
        %v2765 = vmul.f32 %v2532, %v2725
        %v2766 = vmul.f32 %v2423, %v2726
        %v2767 = vmul.f32 %v2425, %v2726
        %v2768 = vmul.f32 %v2536, %v2726
        %v2769 = vmul.f32 %v2538, %v2726
        %v2770 = vmul.f32 %v2427, %v2727
        %v2771 = vmul.f32 %v2429, %v2727
        %v2772 = vmul.f32 %v2540, %v2727
        %v2773 = vmul.f32 %v2542, %v2727
        %v2774 = vmul.f32 %v2433, %v2728
        %v2775 = vmul.f32 %v2435, %v2728
        %v2776 = vmul.f32 %v2546, %v2728
        %v2777 = vmul.f32 %v2548, %v2728
        %v2778 = vmul.f32 %v2437, %v2729
        %v2779 = vmul.f32 %v2439, %v2729
        %v2780 = vmul.f32 %v2550, %v2729
        %v2781 = vmul.f32 %v2552, %v2729
        %v2782 = vmul.f32 %v2443, %v2730
        %v2783 = vmul.f32 %v2445, %v2730
        %v2784 = vmul.f32 %v2556, %v2730
        %v2785 = vmul.f32 %v2558, %v2730
        %v2786 = vmul.f32 %v2447, %v2731
        %v2787 = vmul.f32 %v2449, %v2731
        %v2788 = vmul.f32 %v2560, %v2731
        %v2789 = vmul.f32 %v2562, %v2731
        %v2790 = vmul.f32 %v2453, %v2732
        %v2791 = vmul.f32 %v2455, %v2732
        %v2792 = vmul.f32 %v2566, %v2732
        %v2793 = vmul.f32 %v2568, %v2732
        %v2794 = vmul.f32 %v2457, %v2733
        %v2795 = vmul.f32 %v2459, %v2733
        %v2796 = vmul.f32 %v2570, %v2733
        %v2797 = vmul.f32 %v2572, %v2733
        %2798 = vst [vmem:[%s327] sm:$0xff] %v2734
        %2799 = vst [vmem:[%s327 + $0x8] sm:$0xff] %v2735
        %2800 = vst [vmem:[%s327 + $0x10] sm:$0xff] %v2736
        %2801 = vst [vmem:[%s327 + $0x18] sm:$0xff] %v2737
        %2802 = vst [vmem:[%s327 + $0x20] sm:$0xff] %v2738
        %2803 = vst [vmem:[%s327 + $0x28] sm:$0xff] %v2739
        %2804 = vst [vmem:[%s327 + $0x30] sm:$0xff] %v2740
        %2805 = vst [vmem:[%s327 + $0x38] sm:$0xff] %v2741
        %2806 = vst [vmem:[%s327 + $0x40] sm:$0xff] %v2742
        %2807 = vst [vmem:[%s327 + $0x48] sm:$0xff] %v2743
        %2808 = vst [vmem:[%s327 + $0x50] sm:$0xff] %v2744
        %2809 = vst [vmem:[%s327 + $0x58] sm:$0xff] %v2745
        %2810 = vst [vmem:[%s327 + $0x60] sm:$0xff] %v2746
        %2811 = vst [vmem:[%s327 + $0x68] sm:$0xff] %v2747
        %2812 = vst [vmem:[%s327 + $0x70] sm:$0xff] %v2748
        %2813 = vst [vmem:[%s327 + $0x78] sm:$0xff] %v2749
        %2814 = vst [vmem:[%s327 + $0x80] sm:$0xff] %v2750
        %2815 = vst [vmem:[%s327 + $0x88] sm:$0xff] %v2751
        %2816 = vst [vmem:[%s327 + $0x90] sm:$0xff] %v2752
        %2817 = vst [vmem:[%s327 + $0x98] sm:$0xff] %v2753
        %2818 = vst [vmem:[%s327 + $0xa0] sm:$0xff] %v2754
        %2819 = vst [vmem:[%s327 + $0xa8] sm:$0xff] %v2755
        %2820 = vst [vmem:[%s327 + $0xb0] sm:$0xff] %v2756
        %2821 = vst [vmem:[%s327 + $0xb8] sm:$0xff] %v2757
        %2822 = vst [vmem:[%s327 + $0xc0] sm:$0xff] %v2758
        %2823 = vst [vmem:[%s327 + $0xc8] sm:$0xff] %v2759
        %2824 = vst [vmem:[%s327 + $0xd0] sm:$0xff] %v2760
        %2825 = vst [vmem:[%s327 + $0xd8] sm:$0xff] %v2761
        %2826 = vst [vmem:[%s327 + $0xe0] sm:$0xff] %v2762
        %2827 = vst [vmem:[%s327 + $0xe8] sm:$0xff] %v2763
        %2828 = vst [vmem:[%s327 + $0xf0] sm:$0xff] %v2764
        %2829 = vst [vmem:[%s327 + $0xf8] sm:$0xff] %v2765
        %2830 = vst [vmem:[%s327 + $0x100] sm:$0xff] %v2766
        %2831 = vst [vmem:[%s327 + $0x108] sm:$0xff] %v2767
        %2832 = vst [vmem:[%s327 + $0x110] sm:$0xff] %v2768
        %2833 = vst [vmem:[%s327 + $0x118] sm:$0xff] %v2769
        %2834 = vst [vmem:[%s327 + $0x120] sm:$0xff] %v2770
        %2835 = vst [vmem:[%s327 + $0x128] sm:$0xff] %v2771
        %2836 = vst [vmem:[%s327 + $0x130] sm:$0xff] %v2772
        %2837 = vst [vmem:[%s327 + $0x138] sm:$0xff] %v2773
        %2838 = vst [vmem:[%s327 + $0x140] sm:$0xff] %v2774
        %2839 = vst [vmem:[%s327 + $0x148] sm:$0xff] %v2775
        %2840 = vst [vmem:[%s327 + $0x150] sm:$0xff] %v2776
        %2841 = vst [vmem:[%s327 + $0x158] sm:$0xff] %v2777
        %2842 = vst [vmem:[%s327 + $0x160] sm:$0xff] %v2778
        %2843 = vst [vmem:[%s327 + $0x168] sm:$0xff] %v2779
        %2844 = vst [vmem:[%s327 + $0x170] sm:$0xff] %v2780
        %2845 = vst [vmem:[%s327 + $0x178] sm:$0xff] %v2781
        %2846 = vst [vmem:[%s327 + $0x180] sm:$0xff] %v2782
        %2847 = vst [vmem:[%s327 + $0x188] sm:$0xff] %v2783
        %2848 = vst [vmem:[%s327 + $0x190] sm:$0xff] %v2784
        %2849 = vst [vmem:[%s327 + $0x198] sm:$0xff] %v2785
        %2850 = vst [vmem:[%s327 + $0x1a0] sm:$0xff] %v2786
        %2851 = vst [vmem:[%s327 + $0x1a8] sm:$0xff] %v2787
        %2852 = vst [vmem:[%s327 + $0x1b0] sm:$0xff] %v2788
        %2853 = vst [vmem:[%s327 + $0x1b8] sm:$0xff] %v2789
        %2854 = vst [vmem:[%s327 + $0x1c0] sm:$0xff] %v2790
        %2855 = vst [vmem:[%s327 + $0x1c8] sm:$0xff] %v2791
        %2856 = vst [vmem:[%s327 + $0x1d0] sm:$0xff] %v2792
        %2857 = vst [vmem:[%s327 + $0x1d8] sm:$0xff] %v2793
        %2858 = vst [vmem:[%s327 + $0x1e0] sm:$0xff] %v2794
        %2859 = vst [vmem:[%s327 + $0x1e8] sm:$0xff] %v2795
        %2860 = vst [vmem:[%s327 + $0x1f0] sm:$0xff] %v2796
        %2861 = vst [vmem:[%s327 + $0x1f8] sm:$0xff] %v2797
        %s2862 = sand.u32 %s164, 1
        %s2863 = scalar_lea.sflag [#allocation4], %s2862
        %s2864 = sand.u32 %s164, 1
        %s2865 = smul.addr %s2864, 512
        %s2866 = scalar_lea.vmem [#allocation11], %s2865
        // Predicated region
        $region65: #{tpu_custom_call.1} parent=43 // pred_check
          %p2867 = pneg %p174
        $region66: #{tpu_custom_call.1} parent=43 // pred_check_branch
          %2869 = sbr.rel (%p2867) target = $region68
        $region67: #{tpu_custom_call.1} parent=43 // pred_region
          %s2871 = ssub.s32 8192, 8192
          %2872 = vsyncadd %s2863, %s2871
          %s2873 = smul.addr %s25, 64
          %s2874 = smul.addr %s2873, 128
          %s2875 = scalar_lea.hbm %s6, %s2874
          %s2876 = sshll.u32 %s2866, 4
          %s2877 = int_to_ptr.vmem [resolvable:$true] %s2876
          %2882 = dma.vmem_to_hbm [thread:$0]  %s2877, 8192, %s2875, %s2863, 512, 512, 32
        $region68: #{tpu_custom_call.1} parent=43 // pred_fallthru
          _
      $region44: #{tpu_custom_call.1} parent=5 // pred_fallthru
        _
      %p2883 = scmp.le.s32.totalorder 2, %s20
      // Predicated region
      $region69: #{tpu_custom_call.1} parent=5 // pred_check
        %p2884 = pneg %p2883
      $region70: #{tpu_custom_call.1} parent=5 // pred_check_branch
        %2886 = sbr.rel (%p2884) target = $region72
      $region71: #{tpu_custom_call.1} parent=5 // pred_region
        %s2887 = ssub.s32 %s20, 2
        // Predicated region
        $region73: #{tpu_custom_call.1} parent=71 // pred_check
          %p2888 = pneg %p180
        $region74: #{tpu_custom_call.1} parent=71 // pred_check_branch
          %2890 = sbr.rel (%p2888) target = $region76
        $region75: #{tpu_custom_call.1} parent=71 // pred_region
          %s2891 = sand.u32 %s165, 1
          %s2892 = scalar_lea.sflag [#allocation4], %s2891
          %s2893 = sand.u32 %s165, 1
          %s2894 = smul.addr %s2893, 512
          %s2895 = scalar_lea.vmem [#allocation11], %s2894
          %2896 = dma.done %s2892, 8192
        $region76: #{tpu_custom_call.1} parent=71 // pred_fallthru
          _
      $region72: #{tpu_custom_call.1} parent=5 // pred_fallthru
        _
    $region6: #{tpu_custom_call.1} parent=1 // loop_footer
      %s24 = sadd.s32 1, %s20
    $region7: #{tpu_custom_call.1} parent=1 // loop_footer_branch
      %19 = sbr.rel target = $region3
    $region8: #{tpu_custom_call.1} parent=1 // loop_exit
      _
    %2897 = vsyncpa [#allocation3], 1
    %s2898 = scalar_lea.sflag [#allocation3], 1
    %2899 = vsyncpa %s2898, 1
    %2900 = vsyncpa [#allocation6], 1
    %2901 = vsyncpa [#allocation9], 1
    %2902 = vsyncpa [#allocation4], 1
    %s2903 = scalar_lea.sflag [#allocation4], 1
    %2904 = vsyncpa %s2903, 1

</llo_original>
